<compile_context>
chip_gen: v7x
topology: tpu7x:2x2x1
jax: 0.10.0
libtpu: 0.0.40
codegen_flags: <defaults>
</compile_context>

<pallas_src>
import math

import jax
import jax.numpy as jnp
import numpy as np
from jax.experimental import pallas as pl
from jax.experimental.pallas import tpu as pltpu

NUM_HEADS = 4  # attention_config.num_attention_heads


def _layernorm(v, g, b, eps):
    mu = jnp.mean(v, axis=-1, keepdims=True)
    var = jnp.mean((v - mu) ** 2, axis=-1, keepdims=True)
    return (v - mu) * jax.lax.rsqrt(var + eps) * g + b


# rows of the packed (10, H) vector input
_G1, _B1, _BQ, _BK, _BV, _BO, _G2, _B2, _G3, _B3 = range(10)


def feature_extractor_kernel(lw_ref, x_ref, mask_ref, vec_ref, w_ref, out_ref):
    # Per grid step (one block of TB batch elements):
    #   lw_ref   : (L,)            SMEM   softmax(layer_weights), precomputed
    #   x_ref    : (L, TB, S, H)   VMEM   hidden states in the original layout
    #   mask_ref : (TB, 1, S)      VMEM
    #   vec_ref  : (10, H)         VMEM   packed gains/biases (constant block)
    #   w_ref    : (4, H, H)       VMEM   packed wq/wk/wv/wo   (constant block)
    #   out_ref  : (1, TB, H)      VMEM
    L, TB, S, H = x_ref.shape
    HD = H // NUM_HEADS
    M = TB * S
    scale = 1.0 / math.sqrt(HD)

    # ---- weighted average of the top L transformer layers -------------------
    enc3 = lw_ref[0] * x_ref[0]
    for l in range(1, L):
        enc3 = enc3 + lw_ref[l] * x_ref[l]            # (TB, S, H)
    enc = enc3.reshape(M, H)                          # dense (TB*S, H) slab

    # ---- mha_layer_norm (eps = 1e-7) -----------------------------------------
    enc = _layernorm(enc, vec_ref[_G1, :], vec_ref[_B1, :], 1e-7)

    # ---- extended attention mask bias ----------------------------------------
    mask = mask_ref[:, 0, :]                          # (TB, S)
    bias = (1.0 - mask) * -10000.0                    # (TB, S) along key axis

    # ---- QKV projections on the whole slab (dense MXU work) -------------------
    wq, wk, wv, wo = w_ref[0], w_ref[1], w_ref[2], w_ref[3]
    q = jnp.dot(enc, wq, preferred_element_type=jnp.float32) + vec_ref[_BQ, :]
    k = jnp.dot(enc, wk, preferred_element_type=jnp.float32) + vec_ref[_BK, :]
    v = jnp.dot(enc, wv, preferred_element_type=jnp.float32) + vec_ref[_BV, :]
    q3 = q.reshape(TB, S, H)
    k3 = k.reshape(TB, S, H)
    v3 = v.reshape(TB, S, H)

    # ---- BertSelfAttention + BertSelfOutput dense, fused per head --------------
    # acc = enc (residual) + bo + sum_h ctx_h @ Wo[h]; no concat, no narrow stores
    acc = enc + vec_ref[_BO, :]
    for h in range(NUM_HEADS):
        sl = slice(h * HD, (h + 1) * HD)
        qh, kh, vh = q3[:, :, sl], k3[:, :, sl], v3[:, :, sl]        # (TB, S, HD)
        s = jnp.einsum('bqd,bkd->bqk', qh, kh,
                       preferred_element_type=jnp.float32) * scale   # (TB, S, S)
        s = s + bias[:, None, :]
        s = s - jnp.max(s, axis=-1, keepdims=True)
        p = jnp.exp(s)
        p = p * pl.reciprocal(jnp.sum(p, axis=-1, keepdims=True), approx=False)
        ctx_h = jnp.einsum('bqk,bkd->bqd', p, vh,
                           preferred_element_type=jnp.float32)        # (TB, S, HD)
        acc = acc + jnp.dot(ctx_h.reshape(M, HD), wo[sl, :],
                            preferred_element_type=jnp.float32)
    attn = _layernorm(acc, vec_ref[_G2, :], vec_ref[_B2, :], 1e-12)   # (M, H)

    # ---- MeanPooling (mask-weighted mean over sequence) ------------------------
    attn3 = attn.reshape(TB, S, H)
    sum_emb = jnp.sum(attn3 * mask[:, :, None], axis=1)               # (TB, H)
    sum_mask = jnp.maximum(jnp.sum(mask, axis=-1, keepdims=True), 1e-9)
    pooled = sum_emb * pl.reciprocal(sum_mask, approx=False)          # (TB, H)

    # ---- final layer_norm (eps = 1e-7), dense (TB, H) store ---------------------
    out_ref[0] = _layernorm(pooled, vec_ref[_G3, :], vec_ref[_B3, :], 1e-7)


def feature_extractor(hidden_states, attention_mask, params, *, block_b=None):
    """hidden_states: (L, B, S, H) f32, attention_mask: (B, S) f32 -> (B, H) f32."""
    L, B, S, H = hidden_states.shape
    assert H % NUM_HEADS == 0

    # Batch blocking: aim for >= 128 sublanes of work per grid step (TB*S >= 128)
    # without exceeding the batch; pad the batch with masked-out rows if needed.
    if block_b is None:
        block_b = max(1, min(B, pl.cdiv(128, S)))
    tb = block_b
    nb = pl.cdiv(B, tb)
    b_pad = nb * tb

    x = hidden_states.astype(jnp.float32)              # keep (L, B, S, H): no transpose
    mask = attention_mask.astype(jnp.float32)
    if b_pad != B:
        x = jnp.pad(x, ((0, 0), (0, b_pad - B), (0, 0), (0, 0)))
        mask = jnp.pad(mask, ((0, b_pad - B), (0, 0)))  # padded rows fully masked
    mask3 = mask.reshape(b_pad, 1, S)

    # tiny host-side glue: softmax over the L layer weights + parameter packing
    lw = jax.nn.softmax(params['layer_weights']).astype(jnp.float32)          # (L,)
    vecs = jnp.stack([params['g1'], params['b1'],
                      params['bq'], params['bk'], params['bv'], params['bo'],
                      params['g2'], params['b2'],
                      params['g3'], params['b3']]).astype(jnp.float32)        # (10, H)
    weights = jnp.stack([params['wq'], params['wk'],
                         params['wv'], params['wo']]).astype(jnp.float32)     # (4, H, H)

    in_specs = [
        pl.BlockSpec(memory_space=pltpu.MemorySpace.SMEM),            # lw (scalars)
        pl.BlockSpec((L, tb, S, H), lambda b: (0, b, 0, 0)),          # x, original layout
        pl.BlockSpec((tb, 1, S), lambda b: (b, 0, 0)),                # mask
        # constant-index blocks: DMA'd once, revisited on subsequent steps
        pl.BlockSpec((10, H), lambda b: (0, 0)),                      # packed vectors
        pl.BlockSpec((4, H, H), lambda b: (0, 0, 0)),                 # packed weights
    ]

    out = pl.pallas_call(
        feature_extractor_kernel,
        grid=(nb,),
        in_specs=in_specs,
        out_specs=pl.BlockSpec((1, tb, H), lambda b: (b, 0, 0)),
        out_shape=jax.ShapeDtypeStruct((nb, tb, H), jnp.float32),
        compiler_params=pltpu.CompilerParams(
            dimension_semantics=("parallel",),
            vmem_limit_bytes=32 * 1024 * 1024,
        ),
    )(lw, x, mask3, vecs, weights)
    return out.reshape(b_pad, H)[:B]


def feature_extractor_ref(hidden_states, attention_mask, params):
    """Pure-JAX reference mirroring the PyTorch forward."""
    L, B, S, H = hidden_states.shape
    HD = H // NUM_HEADS
    lw = jax.nn.softmax(params['layer_weights'])
    enc = jnp.einsum('l,lbsh->bsh', lw, hidden_states)

    def ln(v, g, b, eps):
        mu = v.mean(-1, keepdims=True)
        var = ((v - mu) ** 2).mean(-1, keepdims=True)
        return (v - mu) / jnp.sqrt(var + eps) * g + b

    enc = ln(enc, params['g1'], params['b1'], 1e-7)
    mask = attention_mask
    bias = (1.0 - mask) * -10000.0

    def heads(t):
        return jnp.transpose(t.reshape(B, S, NUM_HEADS, HD), (0, 2, 1, 3))

    q = heads(enc @ params['wq'] + params['bq'])
    k = heads(enc @ params['wk'] + params['bk'])
    v = heads(enc @ params['wv'] + params['bv'])
    s = jnp.einsum('bhqd,bhkd->bhqk', q, k) / math.sqrt(HD) + bias[:, None, None, :]
    p = jax.nn.softmax(s, axis=-1)
    ctx = jnp.einsum('bhqk,bhkd->bhqd', p, v)
    ctx = jnp.transpose(ctx, (0, 2, 1, 3)).reshape(B, S, H)
    attn = ctx @ params['wo'] + params['bo']
    attn = ln(attn + enc, params['g2'], params['b2'], 1e-12)
    m = mask[:, :, None]
    pooled = (attn * m).sum(1) / jnp.maximum(m.sum(1), 1e-9)
    return ln(pooled, params['g3'], params['b3'], 1e-7)


if __name__ == "__main__":
    # small shapes consistent with the module: num_layers=4, batch=2, seq=8, hidden=32
    L, B, S, H = 4, 2, 8, 32
    key = jax.random.PRNGKey(0)
    ks = jax.random.split(key, 12)

    params = {
        # nn.Parameter(linspace(-5, 5, num_layers)), softmaxed in forward
        'layer_weights': jnp.linspace(-5.0, 5.0, L).astype(jnp.float32),
        # mha_layer_norm
        'g1': (1.0 + 0.1 * jax.random.normal(ks[0], (H,))).astype(jnp.float32),
        'b1': (0.1 * jax.random.normal(ks[1], (H,))).astype(jnp.float32),
        # BertSelfAttention q/k/v linears (stored as (in, out))
        'wq': (0.05 * jax.random.normal(ks[2], (H, H))).astype(jnp.float32),
        'bq': (0.02 * jax.random.normal(ks[3], (H,))).astype(jnp.float32),
        'wk': (0.05 * jax.random.normal(ks[4], (H, H))).astype(jnp.float32),
        'bk': (0.02 * jax.random.normal(ks[5], (H,))).astype(jnp.float32),
        'wv': (0.05 * jax.random.normal(ks[6], (H, H))).astype(jnp.float32),
        'bv': (0.02 * jax.random.normal(ks[7], (H,))).astype(jnp.float32),
        # BertSelfOutput dense + LayerNorm
        'wo': (0.05 * jax.random.normal(ks[8], (H, H))).astype(jnp.float32),
        'bo': (0.02 * jax.random.normal(ks[9], (H,))).astype(jnp.float32),
        'g2': jnp.ones((H,), jnp.float32),
        'b2': jnp.zeros((H,), jnp.float32),
        # final layer_norm
        'g3': jnp.ones((H,), jnp.float32),
        'b3': jnp.zeros((H,), jnp.float32),
    }

    hidden_states = (0.5 * jax.random.normal(ks[10], (L, B, S, H))).astype(jnp.float32)
    attention_mask = jnp.ones((B, S), jnp.float32).at[1, 6:].set(0.0)  # ragged 2nd example

    out = feature_extractor(hidden_states, attention_mask, params)
    out = jax.block_until_ready(out)

    ref = feature_extractor_ref(hidden_states, attention_mask, params)
    assert out.shape == (B, H)
    np.testing.assert_allclose(np.asarray(out), np.asarray(ref), rtol=1e-4, atol=1e-4)
    print("KERNEL_OK")
</pallas_src>

<mosaic_0001>
module attributes {stable_mosaic.version = 11 : i64} {
  func.func @feature_extractor_kernel(%arg0: i32, %arg1: memref<4xf32, #tpu.memory_space<smem>>, %arg2: memref<4x2x8x32xf32, #tpu.memory_space<vmem>>, %arg3: memref<2x1x8xf32, #tpu.memory_space<vmem>>, %arg4: memref<10x32xf32, #tpu.memory_space<vmem>>, %arg5: memref<4x32x32xf32, #tpu.memory_space<vmem>>, %arg6: memref<1x2x32xf32, #tpu.memory_space<vmem>>) attributes {dimension_semantics = [#tpu.dimension_semantics<parallel>], iteration_bounds = array<i64: 1>, scalar_prefetch = 0 : i64, scratch_operands = 0 : i64, tpu.core_type = #tpu.core_type<tc>, window_params = [{transform_indices = @transform_0, window_bounds = array<i64: 4>}, {transform_indices = @transform_1, window_bounds = array<i64: 4, 2, 8, 32>}, {transform_indices = @transform_2, window_bounds = array<i64: 2, 1, 8>}, {pipeline_mode = #tpu.pipeline_mode<synchronous>, transform_indices = @transform_3, window_bounds = array<i64: 10, 32>}, {pipeline_mode = #tpu.pipeline_mode<synchronous>, transform_indices = @transform_4, window_bounds = array<i64: 4, 32, 32>}, {transform_indices = @transform_5, window_bounds = array<i64: 1, 2, 32>}]} {
    %c0 = arith.constant 0 : index
    %0 = memref.load %arg1[%c0] : memref<4xf32, #tpu.memory_space<smem>>
    %c0_0 = arith.constant 0 : index
    %c0_1 = arith.constant 0 : index
    %c0_2 = arith.constant 0 : index
    %c0_3 = arith.constant 0 : index
    %1 = vector.load %arg2[%c0_0, %c0_1, %c0_2, %c0_3] : memref<4x2x8x32xf32, #tpu.memory_space<vmem>>, vector<1x2x8x32xf32>
    %2 = vector.shape_cast %1 : vector<1x2x8x32xf32> to vector<2x8x32xf32>
    %3 = vector.broadcast %0 : f32 to vector<2x8x32xf32>
    %4 = arith.mulf %3, %2 : vector<2x8x32xf32>
    %c1 = arith.constant 1 : index
    %5 = memref.load %arg1[%c1] : memref<4xf32, #tpu.memory_space<smem>>
    %c1_4 = arith.constant 1 : index
    %c0_5 = arith.constant 0 : index
    %c0_6 = arith.constant 0 : index
    %c0_7 = arith.constant 0 : index
    %6 = vector.load %arg2[%c1_4, %c0_5, %c0_6, %c0_7] : memref<4x2x8x32xf32, #tpu.memory_space<vmem>>, vector<1x2x8x32xf32>
    %7 = vector.shape_cast %6 : vector<1x2x8x32xf32> to vector<2x8x32xf32>
    %8 = vector.broadcast %5 : f32 to vector<2x8x32xf32>
    %9 = arith.mulf %8, %7 : vector<2x8x32xf32>
    %10 = arith.addf %4, %9 : vector<2x8x32xf32>
    %c2 = arith.constant 2 : index
    %11 = memref.load %arg1[%c2] : memref<4xf32, #tpu.memory_space<smem>>
    %c2_8 = arith.constant 2 : index
    %c0_9 = arith.constant 0 : index
    %c0_10 = arith.constant 0 : index
    %c0_11 = arith.constant 0 : index
    %12 = vector.load %arg2[%c2_8, %c0_9, %c0_10, %c0_11] : memref<4x2x8x32xf32, #tpu.memory_space<vmem>>, vector<1x2x8x32xf32>
    %13 = vector.shape_cast %12 : vector<1x2x8x32xf32> to vector<2x8x32xf32>
    %14 = vector.broadcast %11 : f32 to vector<2x8x32xf32>
    %15 = arith.mulf %14, %13 : vector<2x8x32xf32>
    %16 = arith.addf %10, %15 : vector<2x8x32xf32>
    %c3 = arith.constant 3 : index
    %17 = memref.load %arg1[%c3] : memref<4xf32, #tpu.memory_space<smem>>
    %c3_12 = arith.constant 3 : index
    %c0_13 = arith.constant 0 : index
    %c0_14 = arith.constant 0 : index
    %c0_15 = arith.constant 0 : index
    %18 = vector.load %arg2[%c3_12, %c0_13, %c0_14, %c0_15] : memref<4x2x8x32xf32, #tpu.memory_space<vmem>>, vector<1x2x8x32xf32>
    %19 = vector.shape_cast %18 : vector<1x2x8x32xf32> to vector<2x8x32xf32>
    %20 = vector.broadcast %17 : f32 to vector<2x8x32xf32>
    %21 = arith.mulf %20, %19 : vector<2x8x32xf32>
    %22 = arith.addf %16, %21 : vector<2x8x32xf32>
    %23 = vector.shape_cast %22 : vector<2x8x32xf32> to vector<16x32xf32>
    %c0_16 = arith.constant 0 : index
    %c0_17 = arith.constant 0 : index
    %24 = vector.load %arg4[%c0_16, %c0_17] : memref<10x32xf32, #tpu.memory_space<vmem>>, vector<1x32xf32>
    %25 = vector.shape_cast %24 : vector<1x32xf32> to vector<32xf32>
    %c1_18 = arith.constant 1 : index
    %c0_19 = arith.constant 0 : index
    %26 = vector.load %arg4[%c1_18, %c0_19] : memref<10x32xf32, #tpu.memory_space<vmem>>, vector<1x32xf32>
    %27 = vector.shape_cast %26 : vector<1x32xf32> to vector<32xf32>
    %cst = arith.constant dense<0.000000e+00> : vector<16xf32>
    %28 = vector.multi_reduction <add>, %23, %cst [1] : vector<16x32xf32> to vector<16xf32>
    %29 = vector.shape_cast %28 : vector<16xf32> to vector<16x1xf32>
    %cst_20 = arith.constant 3.200000e+01 : f32
    %30 = vector.broadcast %cst_20 : f32 to vector<16x1xf32>
    %31 = arith.divf %29, %30 : vector<16x1xf32>
    %32 = vector.broadcast %31 : vector<16x1xf32> to vector<16x32xf32>
    %33 = arith.subf %23, %32 : vector<16x32xf32>
    %34 = arith.mulf %33, %33 : vector<16x32xf32>
    %cst_21 = arith.constant dense<0.000000e+00> : vector<16xf32>
    %35 = vector.multi_reduction <add>, %34, %cst_21 [1] : vector<16x32xf32> to vector<16xf32>
    %36 = vector.shape_cast %35 : vector<16xf32> to vector<16x1xf32>
    %cst_22 = arith.constant 3.200000e+01 : f32
    %37 = vector.broadcast %cst_22 : f32 to vector<16x1xf32>
    %38 = arith.divf %36, %37 : vector<16x1xf32>
    %39 = vector.broadcast %31 : vector<16x1xf32> to vector<16x32xf32>
    %40 = arith.subf %23, %39 : vector<16x32xf32>
    %cst_23 = arith.constant 1.000000e-07 : f32
    %41 = vector.broadcast %cst_23 : f32 to vector<16x1xf32>
    %42 = arith.addf %38, %41 : vector<16x1xf32>
    %43 = math.rsqrt %42 : vector<16x1xf32>
    %44 = vector.broadcast %43 : vector<16x1xf32> to vector<16x32xf32>
    %45 = arith.mulf %40, %44 : vector<16x32xf32>
    %46 = vector.shape_cast %25 : vector<32xf32> to vector<1x32xf32>
    %47 = vector.broadcast %46 : vector<1x32xf32> to vector<16x32xf32>
    %48 = arith.mulf %45, %47 : vector<16x32xf32>
    %49 = vector.shape_cast %27 : vector<32xf32> to vector<1x32xf32>
    %50 = vector.broadcast %49 : vector<1x32xf32> to vector<16x32xf32>
    %51 = arith.addf %48, %50 : vector<16x32xf32>
    %c0_24 = arith.constant 0 : index
    %c0_25 = arith.constant 0 : index
    %c0_26 = arith.constant 0 : index
    %52 = vector.load %arg3[%c0_24, %c0_25, %c0_26] : memref<2x1x8xf32, #tpu.memory_space<vmem>>, vector<2x1x8xf32>
    %53 = vector.shape_cast %52 : vector<2x1x8xf32> to vector<2x8xf32>
    %cst_27 = arith.constant 1.000000e+00 : f32
    %54 = vector.broadcast %cst_27 : f32 to vector<2x8xf32>
    %55 = arith.subf %54, %53 : vector<2x8xf32>
    %cst_28 = arith.constant -1.000000e+04 : f32
    %56 = vector.broadcast %cst_28 : f32 to vector<2x8xf32>
    %57 = arith.mulf %55, %56 : vector<2x8xf32>
    %c0_29 = arith.constant 0 : index
    %c0_30 = arith.constant 0 : index
    %c0_31 = arith.constant 0 : index
    %58 = vector.load %arg5[%c0_29, %c0_30, %c0_31] : memref<4x32x32xf32, #tpu.memory_space<vmem>>, vector<1x32x32xf32>
    %59 = vector.shape_cast %58 : vector<1x32x32xf32> to vector<32x32xf32>
    %c1_32 = arith.constant 1 : index
    %c0_33 = arith.constant 0 : index
    %c0_34 = arith.constant 0 : index
    %60 = vector.load %arg5[%c1_32, %c0_33, %c0_34] : memref<4x32x32xf32, #tpu.memory_space<vmem>>, vector<1x32x32xf32>
    %61 = vector.shape_cast %60 : vector<1x32x32xf32> to vector<32x32xf32>
    %c2_35 = arith.constant 2 : index
    %c0_36 = arith.constant 0 : index
    %c0_37 = arith.constant 0 : index
    %62 = vector.load %arg5[%c2_35, %c0_36, %c0_37] : memref<4x32x32xf32, #tpu.memory_space<vmem>>, vector<1x32x32xf32>
    %63 = vector.shape_cast %62 : vector<1x32x32xf32> to vector<32x32xf32>
    %c3_38 = arith.constant 3 : index
    %c0_39 = arith.constant 0 : index
    %c0_40 = arith.constant 0 : index
    %64 = vector.load %arg5[%c3_38, %c0_39, %c0_40] : memref<4x32x32xf32, #tpu.memory_space<vmem>>, vector<1x32x32xf32>
    %65 = vector.shape_cast %64 : vector<1x32x32xf32> to vector<32x32xf32>
    %cst_41 = arith.constant dense<0.000000e+00> : vector<16x32xf32>
    %66 = tpu.matmul %51, %59, %cst_41 {dimension_numbers = #tpu.dot_dimension_numbers<[1], [0], [0], [1], [0, 0, 1, 1], [], []>} : vector<16x32xf32>, vector<32x32xf32>, vector<16x32xf32> -> vector<16x32xf32>
    %c2_42 = arith.constant 2 : index
    %c0_43 = arith.constant 0 : index
    %67 = vector.load %arg4[%c2_42, %c0_43] : memref<10x32xf32, #tpu.memory_space<vmem>>, vector<1x32xf32>
    %68 = vector.shape_cast %67 : vector<1x32xf32> to vector<32xf32>
    %69 = vector.shape_cast %68 : vector<32xf32> to vector<1x32xf32>
    %70 = vector.broadcast %69 : vector<1x32xf32> to vector<16x32xf32>
    %71 = arith.addf %66, %70 : vector<16x32xf32>
    %cst_44 = arith.constant dense<0.000000e+00> : vector<16x32xf32>
    %72 = tpu.matmul %51, %61, %cst_44 {dimension_numbers = #tpu.dot_dimension_numbers<[1], [0], [0], [1], [0, 0, 1, 1], [], []>} : vector<16x32xf32>, vector<32x32xf32>, vector<16x32xf32> -> vector<16x32xf32>
    %c3_45 = arith.constant 3 : index
    %c0_46 = arith.constant 0 : index
    %73 = vector.load %arg4[%c3_45, %c0_46] : memref<10x32xf32, #tpu.memory_space<vmem>>, vector<1x32xf32>
    %74 = vector.shape_cast %73 : vector<1x32xf32> to vector<32xf32>
    %75 = vector.shape_cast %74 : vector<32xf32> to vector<1x32xf32>
    %76 = vector.broadcast %75 : vector<1x32xf32> to vector<16x32xf32>
    %77 = arith.addf %72, %76 : vector<16x32xf32>
    %cst_47 = arith.constant dense<0.000000e+00> : vector<16x32xf32>
    %78 = tpu.matmul %51, %63, %cst_47 {dimension_numbers = #tpu.dot_dimension_numbers<[1], [0], [0], [1], [0, 0, 1, 1], [], []>} : vector<16x32xf32>, vector<32x32xf32>, vector<16x32xf32> -> vector<16x32xf32>
    %c4 = arith.constant 4 : index
    %c0_48 = arith.constant 0 : index
    %79 = vector.load %arg4[%c4, %c0_48] : memref<10x32xf32, #tpu.memory_space<vmem>>, vector<1x32xf32>
    %80 = vector.shape_cast %79 : vector<1x32xf32> to vector<32xf32>
    %81 = vector.shape_cast %80 : vector<32xf32> to vector<1x32xf32>
    %82 = vector.broadcast %81 : vector<1x32xf32> to vector<16x32xf32>
    %83 = arith.addf %78, %82 : vector<16x32xf32>
    %84 = vector.shape_cast %71 : vector<16x32xf32> to vector<2x8x32xf32>
    %85 = vector.shape_cast %77 : vector<16x32xf32> to vector<2x8x32xf32>
    %86 = vector.shape_cast %83 : vector<16x32xf32> to vector<2x8x32xf32>
    %c5 = arith.constant 5 : index
    %c0_49 = arith.constant 0 : index
    %87 = vector.load %arg4[%c5, %c0_49] : memref<10x32xf32, #tpu.memory_space<vmem>>, vector<1x32xf32>
    %88 = vector.shape_cast %87 : vector<1x32xf32> to vector<32xf32>
    %89 = vector.shape_cast %88 : vector<32xf32> to vector<1x32xf32>
    %90 = vector.broadcast %89 : vector<1x32xf32> to vector<16x32xf32>
    %91 = arith.addf %51, %90 : vector<16x32xf32>
    %92 = vector.extract_strided_slice %84 {offsets = [0, 0, 0], sizes = [2, 8, 8], strides = [1, 1, 1]} : vector<2x8x32xf32> to vector<2x8x8xf32>
    %93 = vector.extract_strided_slice %85 {offsets = [0, 0, 0], sizes = [2, 8, 8], strides = [1, 1, 1]} : vector<2x8x32xf32> to vector<2x8x8xf32>
    %94 = vector.extract_strided_slice %86 {offsets = [0, 0, 0], sizes = [2, 8, 8], strides = [1, 1, 1]} : vector<2x8x32xf32> to vector<2x8x8xf32>
    "tpu.trace_start"() <{level = 10 : i32, message = "bqd,bkd->bqk"}> : () -> ()
    %cst_50 = arith.constant dense<0.000000e+00> : vector<2x8x8xf32>
    %95 = tpu.matmul %92, %93, %cst_50 {dimension_numbers = #tpu.dot_dimension_numbers<[2], [2], [1], [1], [0, 0, 0, 1, 1, 1], [0], [0]>} : vector<2x8x8xf32>, vector<2x8x8xf32>, vector<2x8x8xf32> -> vector<2x8x8xf32>
    "tpu.trace_stop"() : () -> ()
    %cst_51 = arith.constant 0.353553385 : f32
    %96 = vector.broadcast %cst_51 : f32 to vector<2x8x8xf32>
    %97 = arith.mulf %95, %96 : vector<2x8x8xf32>
    %98 = vector.shape_cast %57 : vector<2x8xf32> to vector<2x1x8xf32>
    %99 = vector.broadcast %98 : vector<2x1x8xf32> to vector<2x8x8xf32>
    %100 = arith.addf %97, %99 : vector<2x8x8xf32>
    %cst_52 = arith.constant dense<0xFF800000> : vector<2x8xf32>
    %101 = vector.multi_reduction <maximumf>, %100, %cst_52 [2] : vector<2x8x8xf32> to vector<2x8xf32>
    %102 = vector.shape_cast %101 : vector<2x8xf32> to vector<2x8x1xf32>
    %103 = vector.broadcast %102 : vector<2x8x1xf32> to vector<2x8x8xf32>
    %104 = arith.subf %100, %103 : vector<2x8x8xf32>
    %105 = math.exp %104 : vector<2x8x8xf32>
    %cst_53 = arith.constant dense<0.000000e+00> : vector<2x8xf32>
    %106 = vector.multi_reduction <add>, %105, %cst_53 [2] : vector<2x8x8xf32> to vector<2x8xf32>
    %107 = vector.shape_cast %106 : vector<2x8xf32> to vector<2x8x1xf32>
    %108 = tpu.reciprocal %107 : vector<2x8x1xf32> -> vector<2x8x1xf32>
    %109 = vector.broadcast %108 : vector<2x8x1xf32> to vector<2x8x8xf32>
    %110 = arith.mulf %105, %109 : vector<2x8x8xf32>
    "tpu.trace_start"() <{level = 10 : i32, message = "bqk,bkd->bqd"}> : () -> ()
    %cst_54 = arith.constant dense<0.000000e+00> : vector<2x8x8xf32>
    %111 = tpu.matmul %110, %94, %cst_54 {dimension_numbers = #tpu.dot_dimension_numbers<[2], [1], [1], [2], [0, 0, 0, 1, 1, 2], [0], [0]>} : vector<2x8x8xf32>, vector<2x8x8xf32>, vector<2x8x8xf32> -> vector<2x8x8xf32>
    "tpu.trace_stop"() : () -> ()
    %112 = vector.shape_cast %111 : vector<2x8x8xf32> to vector<16x8xf32>
    %113 = vector.extract_strided_slice %65 {offsets = [0, 0], sizes = [8, 32], strides = [1, 1]} : vector<32x32xf32> to vector<8x32xf32>
    %cst_55 = arith.constant dense<0.000000e+00> : vector<16x32xf32>
    %114 = tpu.matmul %112, %113, %cst_55 {dimension_numbers = #tpu.dot_dimension_numbers<[1], [0], [0], [1], [0, 0, 1, 1], [], []>} : vector<16x8xf32>, vector<8x32xf32>, vector<16x32xf32> -> vector<16x32xf32>
    %115 = arith.addf %91, %114 : vector<16x32xf32>
    %116 = vector.extract_strided_slice %84 {offsets = [0, 0, 8], sizes = [2, 8, 8], strides = [1, 1, 1]} : vector<2x8x32xf32> to vector<2x8x8xf32>
    %117 = vector.extract_strided_slice %85 {offsets = [0, 0, 8], sizes = [2, 8, 8], strides = [1, 1, 1]} : vector<2x8x32xf32> to vector<2x8x8xf32>
    %118 = vector.extract_strided_slice %86 {offsets = [0, 0, 8], sizes = [2, 8, 8], strides = [1, 1, 1]} : vector<2x8x32xf32> to vector<2x8x8xf32>
    "tpu.trace_start"() <{level = 10 : i32, message = "bqd,bkd->bqk"}> : () -> ()
    %cst_56 = arith.constant dense<0.000000e+00> : vector<2x8x8xf32>
    %119 = tpu.matmul %116, %117, %cst_56 {dimension_numbers = #tpu.dot_dimension_numbers<[2], [2], [1], [1], [0, 0, 0, 1, 1, 1], [0], [0]>} : vector<2x8x8xf32>, vector<2x8x8xf32>, vector<2x8x8xf32> -> vector<2x8x8xf32>
    "tpu.trace_stop"() : () -> ()
    %cst_57 = arith.constant 0.353553385 : f32
    %120 = vector.broadcast %cst_57 : f32 to vector<2x8x8xf32>
    %121 = arith.mulf %119, %120 : vector<2x8x8xf32>
    %122 = vector.shape_cast %57 : vector<2x8xf32> to vector<2x1x8xf32>
    %123 = vector.broadcast %122 : vector<2x1x8xf32> to vector<2x8x8xf32>
    %124 = arith.addf %121, %123 : vector<2x8x8xf32>
    %cst_58 = arith.constant dense<0xFF800000> : vector<2x8xf32>
    %125 = vector.multi_reduction <maximumf>, %124, %cst_58 [2] : vector<2x8x8xf32> to vector<2x8xf32>
    %126 = vector.shape_cast %125 : vector<2x8xf32> to vector<2x8x1xf32>
    %127 = vector.broadcast %126 : vector<2x8x1xf32> to vector<2x8x8xf32>
    %128 = arith.subf %124, %127 : vector<2x8x8xf32>
    %129 = math.exp %128 : vector<2x8x8xf32>
    %cst_59 = arith.constant dense<0.000000e+00> : vector<2x8xf32>
    %130 = vector.multi_reduction <add>, %129, %cst_59 [2] : vector<2x8x8xf32> to vector<2x8xf32>
    %131 = vector.shape_cast %130 : vector<2x8xf32> to vector<2x8x1xf32>
    %132 = tpu.reciprocal %131 : vector<2x8x1xf32> -> vector<2x8x1xf32>
    %133 = vector.broadcast %132 : vector<2x8x1xf32> to vector<2x8x8xf32>
    %134 = arith.mulf %129, %133 : vector<2x8x8xf32>
    "tpu.trace_start"() <{level = 10 : i32, message = "bqk,bkd->bqd"}> : () -> ()
    %cst_60 = arith.constant dense<0.000000e+00> : vector<2x8x8xf32>
    %135 = tpu.matmul %134, %118, %cst_60 {dimension_numbers = #tpu.dot_dimension_numbers<[2], [1], [1], [2], [0, 0, 0, 1, 1, 2], [0], [0]>} : vector<2x8x8xf32>, vector<2x8x8xf32>, vector<2x8x8xf32> -> vector<2x8x8xf32>
    "tpu.trace_stop"() : () -> ()
    %136 = vector.shape_cast %135 : vector<2x8x8xf32> to vector<16x8xf32>
    %137 = vector.extract_strided_slice %65 {offsets = [8, 0], sizes = [8, 32], strides = [1, 1]} : vector<32x32xf32> to vector<8x32xf32>
    %cst_61 = arith.constant dense<0.000000e+00> : vector<16x32xf32>
    %138 = tpu.matmul %136, %137, %cst_61 {dimension_numbers = #tpu.dot_dimension_numbers<[1], [0], [0], [1], [0, 0, 1, 1], [], []>} : vector<16x8xf32>, vector<8x32xf32>, vector<16x32xf32> -> vector<16x32xf32>
    %139 = arith.addf %115, %138 : vector<16x32xf32>
    %140 = vector.extract_strided_slice %84 {offsets = [0, 0, 16], sizes = [2, 8, 8], strides = [1, 1, 1]} : vector<2x8x32xf32> to vector<2x8x8xf32>
    %141 = vector.extract_strided_slice %85 {offsets = [0, 0, 16], sizes = [2, 8, 8], strides = [1, 1, 1]} : vector<2x8x32xf32> to vector<2x8x8xf32>
    %142 = vector.extract_strided_slice %86 {offsets = [0, 0, 16], sizes = [2, 8, 8], strides = [1, 1, 1]} : vector<2x8x32xf32> to vector<2x8x8xf32>
    "tpu.trace_start"() <{level = 10 : i32, message = "bqd,bkd->bqk"}> : () -> ()
    %cst_62 = arith.constant dense<0.000000e+00> : vector<2x8x8xf32>
    %143 = tpu.matmul %140, %141, %cst_62 {dimension_numbers = #tpu.dot_dimension_numbers<[2], [2], [1], [1], [0, 0, 0, 1, 1, 1], [0], [0]>} : vector<2x8x8xf32>, vector<2x8x8xf32>, vector<2x8x8xf32> -> vector<2x8x8xf32>
    "tpu.trace_stop"() : () -> ()
    %cst_63 = arith.constant 0.353553385 : f32
    %144 = vector.broadcast %cst_63 : f32 to vector<2x8x8xf32>
    %145 = arith.mulf %143, %144 : vector<2x8x8xf32>
    %146 = vector.shape_cast %57 : vector<2x8xf32> to vector<2x1x8xf32>
    %147 = vector.broadcast %146 : vector<2x1x8xf32> to vector<2x8x8xf32>
    %148 = arith.addf %145, %147 : vector<2x8x8xf32>
    %cst_64 = arith.constant dense<0xFF800000> : vector<2x8xf32>
    %149 = vector.multi_reduction <maximumf>, %148, %cst_64 [2] : vector<2x8x8xf32> to vector<2x8xf32>
    %150 = vector.shape_cast %149 : vector<2x8xf32> to vector<2x8x1xf32>
    %151 = vector.broadcast %150 : vector<2x8x1xf32> to vector<2x8x8xf32>
    %152 = arith.subf %148, %151 : vector<2x8x8xf32>
    %153 = math.exp %152 : vector<2x8x8xf32>
    %cst_65 = arith.constant dense<0.000000e+00> : vector<2x8xf32>
    %154 = vector.multi_reduction <add>, %153, %cst_65 [2] : vector<2x8x8xf32> to vector<2x8xf32>
    %155 = vector.shape_cast %154 : vector<2x8xf32> to vector<2x8x1xf32>
    %156 = tpu.reciprocal %155 : vector<2x8x1xf32> -> vector<2x8x1xf32>
    %157 = vector.broadcast %156 : vector<2x8x1xf32> to vector<2x8x8xf32>
    %158 = arith.mulf %153, %157 : vector<2x8x8xf32>
    "tpu.trace_start"() <{level = 10 : i32, message = "bqk,bkd->bqd"}> : () -> ()
    %cst_66 = arith.constant dense<0.000000e+00> : vector<2x8x8xf32>
    %159 = tpu.matmul %158, %142, %cst_66 {dimension_numbers = #tpu.dot_dimension_numbers<[2], [1], [1], [2], [0, 0, 0, 1, 1, 2], [0], [0]>} : vector<2x8x8xf32>, vector<2x8x8xf32>, vector<2x8x8xf32> -> vector<2x8x8xf32>
    "tpu.trace_stop"() : () -> ()
    %160 = vector.shape_cast %159 : vector<2x8x8xf32> to vector<16x8xf32>
    %161 = vector.extract_strided_slice %65 {offsets = [16, 0], sizes = [8, 32], strides = [1, 1]} : vector<32x32xf32> to vector<8x32xf32>
    %cst_67 = arith.constant dense<0.000000e+00> : vector<16x32xf32>
    %162 = tpu.matmul %160, %161, %cst_67 {dimension_numbers = #tpu.dot_dimension_numbers<[1], [0], [0], [1], [0, 0, 1, 1], [], []>} : vector<16x8xf32>, vector<8x32xf32>, vector<16x32xf32> -> vector<16x32xf32>
    %163 = arith.addf %139, %162 : vector<16x32xf32>
    %164 = vector.extract_strided_slice %84 {offsets = [0, 0, 24], sizes = [2, 8, 8], strides = [1, 1, 1]} : vector<2x8x32xf32> to vector<2x8x8xf32>
    %165 = vector.extract_strided_slice %85 {offsets = [0, 0, 24], sizes = [2, 8, 8], strides = [1, 1, 1]} : vector<2x8x32xf32> to vector<2x8x8xf32>
    %166 = vector.extract_strided_slice %86 {offsets = [0, 0, 24], sizes = [2, 8, 8], strides = [1, 1, 1]} : vector<2x8x32xf32> to vector<2x8x8xf32>
    "tpu.trace_start"() <{level = 10 : i32, message = "bqd,bkd->bqk"}> : () -> ()
    %cst_68 = arith.constant dense<0.000000e+00> : vector<2x8x8xf32>
    %167 = tpu.matmul %164, %165, %cst_68 {dimension_numbers = #tpu.dot_dimension_numbers<[2], [2], [1], [1], [0, 0, 0, 1, 1, 1], [0], [0]>} : vector<2x8x8xf32>, vector<2x8x8xf32>, vector<2x8x8xf32> -> vector<2x8x8xf32>
    "tpu.trace_stop"() : () -> ()
    %cst_69 = arith.constant 0.353553385 : f32
    %168 = vector.broadcast %cst_69 : f32 to vector<2x8x8xf32>
    %169 = arith.mulf %167, %168 : vector<2x8x8xf32>
    %170 = vector.shape_cast %57 : vector<2x8xf32> to vector<2x1x8xf32>
    %171 = vector.broadcast %170 : vector<2x1x8xf32> to vector<2x8x8xf32>
    %172 = arith.addf %169, %171 : vector<2x8x8xf32>
    %cst_70 = arith.constant dense<0xFF800000> : vector<2x8xf32>
    %173 = vector.multi_reduction <maximumf>, %172, %cst_70 [2] : vector<2x8x8xf32> to vector<2x8xf32>
    %174 = vector.shape_cast %173 : vector<2x8xf32> to vector<2x8x1xf32>
    %175 = vector.broadcast %174 : vector<2x8x1xf32> to vector<2x8x8xf32>
    %176 = arith.subf %172, %175 : vector<2x8x8xf32>
    %177 = math.exp %176 : vector<2x8x8xf32>
    %cst_71 = arith.constant dense<0.000000e+00> : vector<2x8xf32>
    %178 = vector.multi_reduction <add>, %177, %cst_71 [2] : vector<2x8x8xf32> to vector<2x8xf32>
    %179 = vector.shape_cast %178 : vector<2x8xf32> to vector<2x8x1xf32>
    %180 = tpu.reciprocal %179 : vector<2x8x1xf32> -> vector<2x8x1xf32>
    %181 = vector.broadcast %180 : vector<2x8x1xf32> to vector<2x8x8xf32>
    %182 = arith.mulf %177, %181 : vector<2x8x8xf32>
    "tpu.trace_start"() <{level = 10 : i32, message = "bqk,bkd->bqd"}> : () -> ()
    %cst_72 = arith.constant dense<0.000000e+00> : vector<2x8x8xf32>
    %183 = tpu.matmul %182, %166, %cst_72 {dimension_numbers = #tpu.dot_dimension_numbers<[2], [1], [1], [2], [0, 0, 0, 1, 1, 2], [0], [0]>} : vector<2x8x8xf32>, vector<2x8x8xf32>, vector<2x8x8xf32> -> vector<2x8x8xf32>
    "tpu.trace_stop"() : () -> ()
    %184 = vector.shape_cast %183 : vector<2x8x8xf32> to vector<16x8xf32>
    %185 = vector.extract_strided_slice %65 {offsets = [24, 0], sizes = [8, 32], strides = [1, 1]} : vector<32x32xf32> to vector<8x32xf32>
    %cst_73 = arith.constant dense<0.000000e+00> : vector<16x32xf32>
    %186 = tpu.matmul %184, %185, %cst_73 {dimension_numbers = #tpu.dot_dimension_numbers<[1], [0], [0], [1], [0, 0, 1, 1], [], []>} : vector<16x8xf32>, vector<8x32xf32>, vector<16x32xf32> -> vector<16x32xf32>
    %187 = arith.addf %163, %186 : vector<16x32xf32>
    %c6 = arith.constant 6 : index
    %c0_74 = arith.constant 0 : index
    %188 = vector.load %arg4[%c6, %c0_74] : memref<10x32xf32, #tpu.memory_space<vmem>>, vector<1x32xf32>
    %189 = vector.shape_cast %188 : vector<1x32xf32> to vector<32xf32>
    %c7 = arith.constant 7 : index
    %c0_75 = arith.constant 0 : index
    %190 = vector.load %arg4[%c7, %c0_75] : memref<10x32xf32, #tpu.memory_space<vmem>>, vector<1x32xf32>
    %191 = vector.shape_cast %190 : vector<1x32xf32> to vector<32xf32>
    %cst_76 = arith.constant dense<0.000000e+00> : vector<16xf32>
    %192 = vector.multi_reduction <add>, %187, %cst_76 [1] : vector<16x32xf32> to vector<16xf32>
    %193 = vector.shape_cast %192 : vector<16xf32> to vector<16x1xf32>
    %cst_77 = arith.constant 3.200000e+01 : f32
    %194 = vector.broadcast %cst_77 : f32 to vector<16x1xf32>
    %195 = arith.divf %193, %194 : vector<16x1xf32>
    %196 = vector.broadcast %195 : vector<16x1xf32> to vector<16x32xf32>
    %197 = arith.subf %187, %196 : vector<16x32xf32>
    %198 = arith.mulf %197, %197 : vector<16x32xf32>
    %cst_78 = arith.constant dense<0.000000e+00> : vector<16xf32>
    %199 = vector.multi_reduction <add>, %198, %cst_78 [1] : vector<16x32xf32> to vector<16xf32>
    %200 = vector.shape_cast %199 : vector<16xf32> to vector<16x1xf32>
    %cst_79 = arith.constant 3.200000e+01 : f32
    %201 = vector.broadcast %cst_79 : f32 to vector<16x1xf32>
    %202 = arith.divf %200, %201 : vector<16x1xf32>
    %203 = vector.broadcast %195 : vector<16x1xf32> to vector<16x32xf32>
    %204 = arith.subf %187, %203 : vector<16x32xf32>
    %cst_80 = arith.constant 9.99999996E-13 : f32
    %205 = vector.broadcast %cst_80 : f32 to vector<16x1xf32>
    %206 = arith.addf %202, %205 : vector<16x1xf32>
    %207 = math.rsqrt %206 : vector<16x1xf32>
    %208 = vector.broadcast %207 : vector<16x1xf32> to vector<16x32xf32>
    %209 = arith.mulf %204, %208 : vector<16x32xf32>
    %210 = vector.shape_cast %189 : vector<32xf32> to vector<1x32xf32>
    %211 = vector.broadcast %210 : vector<1x32xf32> to vector<16x32xf32>
    %212 = arith.mulf %209, %211 : vector<16x32xf32>
    %213 = vector.shape_cast %191 : vector<32xf32> to vector<1x32xf32>
    %214 = vector.broadcast %213 : vector<1x32xf32> to vector<16x32xf32>
    %215 = arith.addf %212, %214 : vector<16x32xf32>
    %216 = vector.shape_cast %215 : vector<16x32xf32> to vector<2x8x32xf32>
    %217 = vector.shape_cast %53 : vector<2x8xf32> to vector<2x8x1xf32>
    %218 = vector.broadcast %217 : vector<2x8x1xf32> to vector<2x8x32xf32>
    %219 = arith.mulf %216, %218 : vector<2x8x32xf32>
    %cst_81 = arith.constant dense<0.000000e+00> : vector<2x32xf32>
    %220 = vector.multi_reduction <add>, %219, %cst_81 [1] : vector<2x8x32xf32> to vector<2x32xf32>
    %cst_82 = arith.constant dense<0.000000e+00> : vector<2xf32>
    %221 = vector.multi_reduction <add>, %53, %cst_82 [1] : vector<2x8xf32> to vector<2xf32>
    %222 = vector.shape_cast %221 : vector<2xf32> to vector<2x1xf32>
    %cst_83 = arith.constant 9.99999971E-10 : f32
    %223 = vector.broadcast %cst_83 : f32 to vector<2x1xf32>
    %224 = arith.maximumf %222, %223 : vector<2x1xf32>
    %225 = tpu.reciprocal %224 : vector<2x1xf32> -> vector<2x1xf32>
    %226 = vector.broadcast %225 : vector<2x1xf32> to vector<2x32xf32>
    %227 = arith.mulf %220, %226 : vector<2x32xf32>
    %c8 = arith.constant 8 : index
    %c0_84 = arith.constant 0 : index
    %228 = vector.load %arg4[%c8, %c0_84] : memref<10x32xf32, #tpu.memory_space<vmem>>, vector<1x32xf32>
    %229 = vector.shape_cast %228 : vector<1x32xf32> to vector<32xf32>
    %c9 = arith.constant 9 : index
    %c0_85 = arith.constant 0 : index
    %230 = vector.load %arg4[%c9, %c0_85] : memref<10x32xf32, #tpu.memory_space<vmem>>, vector<1x32xf32>
    %231 = vector.shape_cast %230 : vector<1x32xf32> to vector<32xf32>
    %cst_86 = arith.constant dense<0.000000e+00> : vector<2xf32>
    %232 = vector.multi_reduction <add>, %227, %cst_86 [1] : vector<2x32xf32> to vector<2xf32>
    %233 = vector.shape_cast %232 : vector<2xf32> to vector<2x1xf32>
    %cst_87 = arith.constant 3.200000e+01 : f32
    %234 = vector.broadcast %cst_87 : f32 to vector<2x1xf32>
    %235 = arith.divf %233, %234 : vector<2x1xf32>
    %236 = vector.broadcast %235 : vector<2x1xf32> to vector<2x32xf32>
    %237 = arith.subf %227, %236 : vector<2x32xf32>
    %238 = arith.mulf %237, %237 : vector<2x32xf32>
    %cst_88 = arith.constant dense<0.000000e+00> : vector<2xf32>
    %239 = vector.multi_reduction <add>, %238, %cst_88 [1] : vector<2x32xf32> to vector<2xf32>
    %240 = vector.shape_cast %239 : vector<2xf32> to vector<2x1xf32>
    %cst_89 = arith.constant 3.200000e+01 : f32
    %241 = vector.broadcast %cst_89 : f32 to vector<2x1xf32>
    %242 = arith.divf %240, %241 : vector<2x1xf32>
    %243 = vector.broadcast %235 : vector<2x1xf32> to vector<2x32xf32>
    %244 = arith.subf %227, %243 : vector<2x32xf32>
    %cst_90 = arith.constant 1.000000e-07 : f32
    %245 = vector.broadcast %cst_90 : f32 to vector<2x1xf32>
    %246 = arith.addf %242, %245 : vector<2x1xf32>
    %247 = math.rsqrt %246 : vector<2x1xf32>
    %248 = vector.broadcast %247 : vector<2x1xf32> to vector<2x32xf32>
    %249 = arith.mulf %244, %248 : vector<2x32xf32>
    %250 = vector.shape_cast %229 : vector<32xf32> to vector<1x32xf32>
    %251 = vector.broadcast %250 : vector<1x32xf32> to vector<2x32xf32>
    %252 = arith.mulf %249, %251 : vector<2x32xf32>
    %253 = vector.shape_cast %231 : vector<32xf32> to vector<1x32xf32>
    %254 = vector.broadcast %253 : vector<1x32xf32> to vector<2x32xf32>
    %255 = arith.addf %252, %254 : vector<2x32xf32>
    %c0_91 = arith.constant 0 : index
    %c0_92 = arith.constant 0 : index
    %c0_93 = arith.constant 0 : index
    %256 = vector.load %arg6[%c0_91, %c0_92, %c0_93] : memref<1x2x32xf32, #tpu.memory_space<vmem>>, vector<1x2x32xf32>
    %257 = vector.shape_cast %256 : vector<1x2x32xf32> to vector<2x32xf32>
    %258 = vector.shape_cast %255 : vector<2x32xf32> to vector<1x2x32xf32>
    tpu.vector_store %arg6[%c0_91, %c0_92, %c0_93], %258 {strides = array<i32>} : memref<1x2x32xf32, #tpu.memory_space<vmem>>, vector<1x2x32xf32>,
    return
  }
  func.func @transform_0(%arg0: i32) -> i32 {
    %c0_i32 = arith.constant 0 : i32
    %c0_i32_0 = arith.constant 0 : i32
    return %c0_i32 : i32
  }
  func.func @transform_1(%arg0: i32) -> (i32, i32, i32, i32) {
    %c0_i32 = arith.constant 0 : i32
    %c0_i32_0 = arith.constant 0 : i32
    %c0_i32_1 = arith.constant 0 : i32
    %c0_i32_2 = arith.constant 0 : i32
    return %c0_i32, %arg0, %c0_i32_0, %c0_i32_1 : i32, i32, i32, i32
  }
  func.func @transform_2(%arg0: i32) -> (i32, i32, i32) {
    %c0_i32 = arith.constant 0 : i32
    %c0_i32_0 = arith.constant 0 : i32
    %c0_i32_1 = arith.constant 0 : i32
    return %arg0, %c0_i32, %c0_i32_0 : i32, i32, i32
  }
  func.func @transform_3(%arg0: i32) -> (i32, i32) {
    %c0_i32 = arith.constant 0 : i32
    %c0_i32_0 = arith.constant 0 : i32
    %c0_i32_1 = arith.constant 0 : i32
    return %c0_i32, %c0_i32_0 : i32, i32
  }
  func.func @transform_4(%arg0: i32) -> (i32, i32, i32) {
    %c0_i32 = arith.constant 0 : i32
    %c0_i32_0 = arith.constant 0 : i32
    %c0_i32_1 = arith.constant 0 : i32
    %c0_i32_2 = arith.constant 0 : i32
    return %c0_i32, %c0_i32_0, %c0_i32_1 : i32, i32, i32
  }
  func.func @transform_5(%arg0: i32) -> (i32, i32, i32) {
    %c0_i32 = arith.constant 0 : i32
    %c0_i32_0 = arith.constant 0 : i32
    %c0_i32_1 = arith.constant 0 : i32
    return %arg0, %c0_i32, %c0_i32_0 : i32, i32, i32
  }
}

</mosaic_0001>

<llo_original>
// kernel: tpu_custom_call.1
$region0: #{tpu_custom_call.1}
  #allocation0 [shape = 'u32[]', space=smem, size = 0x4, offset = 0x4, fixed_abs, tag = 'smem constant byte address 0x4 - core index']
  #allocation1 [shape = 'u32[144,128]{1,0:T(1,128)}', space=vmem, size = 0x12000, scoped, tag = 'internal scratch']
  %s0 = inlined_call_operand.hbm [shape: f32[4], index: 0, kind: input, shape index: {}]
  %s1 = inlined_call_operand.hbm [shape: f32[4,2,8,32], index: 1, kind: input, shape index: {}]
  %s2 = inlined_call_operand.vmem [shape: f32[2,1,8], index: 2, kind: input, shape index: {}]
  %s3 = inlined_call_operand.hbm [shape: f32[10,32], index: 3, kind: input, shape index: {}]
  %s4 = inlined_call_operand.hbm [shape: f32[4,32,32], index: 4, kind: input, shape index: {}]
  %s5 = inlined_call_operand.hbm [shape: f32[1,2,32], index: 5, kind: output, shape index: {}]
  %s6 = sld [smem:[#allocation0]]
  $region46: #{tpu_custom_call.1} parent=0
    _
  %s8 = ssub.s32 1, %s6
  %s9 = scalar_select 0, %s8, %s6
  $region1: #{tpu_custom_call.1} parent=0
    #allocation2 [shape = 'u8[512]{0}', space=smem, size = 0x200, scoped, tag = 'input window, operand 0, single buffered']
    #allocation3 [shape = 's32[1]{0}', space=sflag, size = 0x4, scoped, tag = 'scoped memory for tpu_custom_call.1']
    #allocation4 [shape = 's32[1]{0}', space=sflag, size = 0x4, scoped, tag = 'scoped memory for tpu_custom_call.1']
    #allocation5 [shape = 's32[1]{0}', space=sflag, size = 0x4, scoped, tag = 'scoped memory for tpu_custom_call.1']
    #allocation6 [shape = 'u8[32768]{0}', space=vmem, size = 0x8000, scoped, tag = 'input window, operand 1, single buffered']
    #allocation7 [shape = 'u8[8192]{0}', space=vmem, size = 0x2000, scoped, tag = 'input window, operand 3, single buffered']
    #allocation8 [shape = 's32[1]{0}', space=sflag, size = 0x4, scoped, tag = 'scoped memory for tpu_custom_call.1']
    #allocation9 [shape = 'u8[65536]{0}', space=vmem, size = 0x10000, scoped, tag = 'input window, operand 4, single buffered']
    #allocation10 [shape = 'u8[1024]{0}', space=vmem, size = 0x400, scoped, tag = 'output window, operand 0, single buffered']
    %10 = vsyncpa [#allocation5], 0
    %11 = vsyncpa [#allocation3], 0
    %12 = vsyncpa [#allocation8], 0
    %13 = vsyncpa [#allocation4], 0
    // Predicated region
    $region2: #{tpu_custom_call.1} parent=1 // pred_check
      _
    $region3: #{tpu_custom_call.1} parent=1 // pred_check_branch
      %15 = sbr.rel (0) target = $region5
    $region4: #{tpu_custom_call.1} parent=1 // pred_region
      %s17 = ssub.s32 16, 16
      %18 = vsyncadd [#allocation5], %s17
      %21 = dma.hbm_to_smem %s0, 16, [#allocation2], [#allocation5]
    $region5: #{tpu_custom_call.1} parent=1 // pred_fallthru
      _
    // Predicated region
    $region6: #{tpu_custom_call.1} parent=1 // pred_check
      _
    $region7: #{tpu_custom_call.1} parent=1 // pred_check_branch
      %23 = sbr.rel (0) target = $region9
    $region8: #{tpu_custom_call.1} parent=1 // pred_region
      %s25 = ssub.s32 1024, 1024
      %26 = vsyncadd [#allocation3], %s25
      %s27 = sshll.u32 [#allocation6], 4
      %s28 = int_to_ptr.vmem [resolvable:$true] %s27
      %33 = dma.hbm_to_vmem [thread:$0]  %s1, 1024, %s28, [#allocation3], 128, 128, 8
    $region9: #{tpu_custom_call.1} parent=1 // pred_fallthru
      _
    // Predicated region
    $region10: #{tpu_custom_call.1} parent=1 // pred_check
      _
    $region11: #{tpu_custom_call.1} parent=1 // pred_check_branch
      %35 = sbr.rel (0) target = $region13
    $region12: #{tpu_custom_call.1} parent=1 // pred_region
      _
    $region13: #{tpu_custom_call.1} parent=1 // pred_fallthru
      _
    // Predicated region
    $region14: #{tpu_custom_call.1} parent=1 // pred_check
      _
    $region15: #{tpu_custom_call.1} parent=1 // pred_check_branch
      %37 = sbr.rel (0) target = $region17
    $region16: #{tpu_custom_call.1} parent=1 // pred_region
      %s39 = ssub.s32 256, 256
      %40 = vsyncadd [#allocation8], %s39
      %s41 = sshll.u32 [#allocation7], 4
      %s42 = int_to_ptr.vmem [resolvable:$true] %s41
      %47 = dma.hbm_to_vmem [thread:$0]  %s3, 256, %s42, [#allocation8], 128, 128, 8
    $region17: #{tpu_custom_call.1} parent=1 // pred_fallthru
      _
    // Predicated region
    $region18: #{tpu_custom_call.1} parent=1 // pred_check
      _
    $region19: #{tpu_custom_call.1} parent=1 // pred_check_branch
      %49 = sbr.rel (0) target = $region21
    $region20: #{tpu_custom_call.1} parent=1 // pred_region
      %s51 = ssub.s32 2048, 2048
      %52 = vsyncadd [#allocation8], %s51
      %s53 = sshll.u32 [#allocation9], 4
      %s54 = int_to_ptr.vmem [resolvable:$true] %s53
      %59 = dma.hbm_to_vmem [thread:$0]  %s4, 2048, %s54, [#allocation8], 128, 128, 8
    $region21: #{tpu_custom_call.1} parent=1 // pred_fallthru
      _
    // Predicated region
    $region22: #{tpu_custom_call.1} parent=1 // pred_check
      _
    $region23: #{tpu_custom_call.1} parent=1 // pred_check_branch
      %61 = sbr.rel (0) target = $region25
    $region24: #{tpu_custom_call.1} parent=1 // pred_region
      %62 = dma.done [#allocation5], 16
    $region25: #{tpu_custom_call.1} parent=1 // pred_fallthru
      _
    // Predicated region
    $region26: #{tpu_custom_call.1} parent=1 // pred_check
      _
    $region27: #{tpu_custom_call.1} parent=1 // pred_check_branch
      %64 = sbr.rel (0) target = $region29
    $region28: #{tpu_custom_call.1} parent=1 // pred_region
      %65 = dma.done [#allocation3], 1024
    $region29: #{tpu_custom_call.1} parent=1 // pred_fallthru
      _
    // Predicated region
    $region30: #{tpu_custom_call.1} parent=1 // pred_check
      _
    $region31: #{tpu_custom_call.1} parent=1 // pred_check_branch
      %67 = sbr.rel (0) target = $region33
    $region32: #{tpu_custom_call.1} parent=1 // pred_region
      %68 = dma.done [#allocation8], 256
    $region33: #{tpu_custom_call.1} parent=1 // pred_fallthru
      _
    // Predicated region
    $region34: #{tpu_custom_call.1} parent=1 // pred_check
      _
    $region35: #{tpu_custom_call.1} parent=1 // pred_check_branch
      %70 = sbr.rel (0) target = $region37
    $region36: #{tpu_custom_call.1} parent=1 // pred_region
      %71 = dma.done [#allocation8], 2048
    $region37: #{tpu_custom_call.1} parent=1 // pred_fallthru
      _
    %72 = sfence
    %s73 = sld [smem:[#allocation2]]
    %v74 = vld [vmem:[#allocation6] sm:$0xff]
    %v75 = vld [vmem:[#allocation6 + $0x8] sm:$0xff]
    %v76 = vstv %s73
    %v77 = vmul.f32 %v76, %v74
    %v78 = vmul.f32 %v76, %v75
    %s79 = sld [smem:[#allocation2 + $0x1]]
    %s80 = scalar_lea.vmem [#allocation6], 16
    %v81 = vld [vmem:[%s80] sm:$0xff]
    %v82 = vld [vmem:[%s80 + $0x8] sm:$0xff]
    %v83 = vstv %s79
    %v84 = vmul.f32 %v83, %v81
    %v85 = vmul.f32 %v83, %v82
    %v86 = vadd.f32 %v77, %v84
    %v87 = vadd.f32 %v78, %v85
    %s88 = sld [smem:[#allocation2 + $0x2]]
    %s89 = scalar_lea.vmem [#allocation6], 32
    %v90 = vld [vmem:[%s89] sm:$0xff]
    %v91 = vld [vmem:[%s89 + $0x8] sm:$0xff]
    %v92 = vstv %s88
    %v93 = vmul.f32 %v92, %v90
    %v94 = vmul.f32 %v92, %v91
    %v95 = vadd.f32 %v86, %v93
    %v96 = vadd.f32 %v87, %v94
    %s97 = sld [smem:[#allocation2 + $0x3]]
    %s98 = scalar_lea.vmem [#allocation6], 48
    %v99 = vld [vmem:[%s98] sm:$0xff]
    %v100 = vld [vmem:[%s98 + $0x8] sm:$0xff]
    %v101 = vstv %s97
    %v102 = vmul.f32 %v101, %v99
    %v103 = vmul.f32 %v101, %v100
    %v104 = vadd.f32 %v95, %v102
    %v105 = vadd.f32 %v96, %v103
    %v106 = vld [vmem:[#allocation7] sm:$0x1]
    %v107 = vld [vmem:[#allocation7 + $0x1] sm:$0x1]
    %vm108 = vcmask 261120
    %v109 = vsel %vm108, %v104, 0.0
    %110 = vadd.xlane.f32.xlu0 %v109
    %v111 = vpop.xlane.xlu0 %110
    %v112 = vsel %vm108, %v105, 0.0
    %113 = vadd.xlane.f32.xlu0 %v112
    %v114 = vpop.xlane.xlu0 %113
    %v115 = vrcp.pop 32.0
    %v116 = vmul.f32 %v111, %v115
    %v117 = vmul.f32 %v114, %v115
    %v118 = vsub.f32 %v104, %v116
    %v119 = vsub.f32 %v105, %v117
    %v120 = vmul.f32 %v118, %v118
    %v121 = vmul.f32 %v119, %v119
    %v122 = vsel %vm108, %v120, 0.0
    %123 = vadd.xlane.f32.xlu0 %v122
    %v124 = vpop.xlane.xlu0 %123
    %v125 = vsel %vm108, %v121, 0.0
    %126 = vadd.xlane.f32.xlu0 %v125
    %v127 = vpop.xlane.xlu0 %126
    %v128 = vmul.f32 %v124, %v115
    %v129 = vmul.f32 %v127, %v115
    %v130 = vadd.f32 %v128, 1e-07
    %v131 = vadd.f32 %v129, 1e-07
    %v132 = vrsqrt.pop %v130
    %v133 = vrsqrt.pop %v131
    %v134 = vmul.f32 %v118, %v132
    %v135 = vmul.f32 %v119, %v133
    %v136 = vlaneseq
    %v137 = vshrl.u32 %v136, 7
    %v138 = vsub.s32 0, %v137
    %v139 = vrot.slane %v106, %v138
    %v140 = vmul.f32 %v134, %v139
    %v141 = vmul.f32 %v135, %v139
    %v142 = vlaneseq
    %v143 = vshrl.u32 %v142, 7
    %v144 = vsub.s32 0, %v143
    %v145 = vrot.slane %v107, %v144
    %v146 = vadd.f32 %v140, %v145
    %v147 = vadd.f32 %v141, %v145
    %v148 = vld [vmem:[%s2] sm:$0x1]
    %v149 = vld [vmem:[%s2 + $0x1] sm:$0x1]
    %v150 = vsub.f32 1.0, %v148
    %v151 = vsub.f32 1.0, %v149
    %v152 = vmul.f32 %v150, -10000.0
    %v153 = vmul.f32 %v151, -10000.0
    %v154 = vld [vmem:[#allocation9] sm:$0xff]
    %v155 = vld [vmem:[#allocation9 + $0x8] sm:$0xff]
    %v156 = vld [vmem:[#allocation9 + $0x10] sm:$0xff]
    %v157 = vld [vmem:[#allocation9 + $0x18] sm:$0xff]
    %s158 = scalar_lea.vmem [#allocation9], 32
    %v159 = vld [vmem:[%s158] sm:$0xff]
    %v160 = vld [vmem:[%s158 + $0x8] sm:$0xff]
    %v161 = vld [vmem:[%s158 + $0x10] sm:$0xff]
    %v162 = vld [vmem:[%s158 + $0x18] sm:$0xff]
    %s163 = scalar_lea.vmem [#allocation9], 64
    %v164 = vld [vmem:[%s163] sm:$0xff]
    %v165 = vld [vmem:[%s163 + $0x8] sm:$0xff]
    %v166 = vld [vmem:[%s163 + $0x10] sm:$0xff]
    %v167 = vld [vmem:[%s163 + $0x18] sm:$0xff]
    %s168 = scalar_lea.vmem [#allocation9], 96
    %v169 = vld [vmem:[%s168] sm:$0xff]
    %v170 = vld [vmem:[%s168 + $0x8] sm:$0xff]
    %v171 = vld [vmem:[%s168 + $0x10] sm:$0xff]
    %v172 = vld [vmem:[%s168 + $0x18] sm:$0xff]
    %v173 = vld [vmem:[#allocation7 + $0x2] sm:$0x1]
    %v174 = vlaneseq
    %v175 = vshrl.u32 %v174, 7
    %v176 = vsub.s32 0, %v175
    %v177 = vrot.slane %v173, %v176
    %v179 = vsel %vm108, %v146, 0
    %v182 = vsel %vm108, %v147, 0
    %184 = vmatprep.subr.mxu0 0.0
    %185 = vmatpush1.msra.mxu0 %v154
    %186 = vmatprep.subr.mxu0 0.0
    %187 = vmatpush1.msra.mxu0 %v155
    %188 = vmatprep.subr.mxu0 0.0
    %189 = vmatpush1.msra.mxu0 %v156
    %190 = vmatprep.subr.mxu0 0.0
    %191 = vmatpush1.msra.mxu0 %v157
    %192 = vmatprep.subr.mxu0 0.0
    %193 = vmatpush1.msra.mxu0 0.0
    %194 = vmatprep.subr.mxu0 0.0
    %195 = vmatpush1.msra.mxu0 0.0
    %196 = vmatprep.subr.mxu0 0.0
    %197 = vmatpush1.msra.mxu0 0.0
    %198 = vmatprep.subr.mxu0 0.0
    %199 = vmatpush1.msra.mxu0 0.0
    %200 = vmatprep.subr.mxu0 0.0
    %201 = vmatpush1.msra.mxu0 0.0
    %202 = vmatprep.subr.mxu0 0.0
    %203 = vmatpush1.msra.mxu0 0.0
    %204 = vmatprep.subr.mxu0 0.0
    %205 = vmatpush1.msra.mxu0 0.0
    %206 = vmatprep.subr.mxu0 0.0
    %207 = vmatpush1.msra.mxu0 0.0
    %208 = vmatprep.subr.mxu0 0.0
    %209 = vmatpush1.msra.mxu0 0.0
    %210 = vmatprep.subr.mxu0 0.0
    %211 = vmatpush1.msra.mxu0 0.0
    %212 = vmatprep.subr.mxu0 0.0
    %213 = vmatpush1.msra.mxu0 0.0
    %214 = vmatprep.subr.mxu0 0.0
    %215 = vmatpush1.msra.mxu0 0.0
    %216 = vmatprep.subr.mxu0 0.0
    %217 = vmatpush1.msra.mxu0 0.0
    %218 = vmatprep.subr.mxu0 0.0
    %219 = vmatpush1.msra.mxu0 0.0
    %220 = vmatprep.subr.mxu0 0.0
    %221 = vmatpush1.msra.mxu0 0.0
    %222 = vmatprep.subr.mxu0 0.0
    %223 = vmatpush1.msra.mxu0 0.0
    %224 = vmatprep.subr.mxu0 0.0
    %225 = vmatpush1.msra.mxu0 0.0
    %226 = vmatprep.subr.mxu0 0.0
    %227 = vmatpush1.msra.mxu0 0.0
    %228 = vmatprep.subr.mxu0 0.0
    %229 = vmatpush1.msra.mxu0 0.0
    %230 = vmatprep.subr.mxu0 0.0
    %231 = vmatpush1.msra.mxu0 0.0
    %232 = vmatprep.subr.mxu0 0.0
    %233 = vmatpush1.msra.mxu0 0.0
    %234 = vmatprep.subr.mxu0 0.0
    %235 = vmatpush1.msra.mxu0 0.0
    %236 = vmatprep.subr.mxu0 0.0
    %237 = vmatpush1.msra.mxu0 0.0
    %238 = vmatprep.subr.mxu0 0.0
    %239 = vmatpush1.msra.mxu0 0.0
    %240 = vmatprep.subr.mxu0 0.0
    %241 = vmatpush1.msra.mxu0 0.0
    %242 = vmatprep.subr.mxu0 0.0
    %243 = vmatpush1.msra.mxu0 0.0
    %244 = vmatprep.subr.mxu0 0.0
    %245 = vmatpush1.msra.mxu0 0.0
    %246 = vmatprep.subr.mxu0 0.0
    %247 = vmatpush1.msra.mxu0 0.0
    %248 = vmatprep.mubr.f32.mxu0 0.0
    %249 = vmatmul.mubr.f32.gmra.mrb[0].mxu0 %v179
    %v250 = vpop.f32.mrb[0].mxu0
    %v251 = vadd.f32 %v177, %v250
    %v252 = vpop.f32.mrb[0].mxu0
    %253 = vmatprep.mubr.f32.mxu0 0.0
    %254 = vmatmul.mubr.f32.gmra.mrb[0].mxu0 %v182
    %v255 = vpop.f32.mrb[0].mxu0
    %v256 = vadd.f32 %v177, %v255
    %v257 = vpop.f32.mrb[0].mxu0
    %258 = vdwg.mxu0
    %v259 = vld [vmem:[#allocation7 + $0x3] sm:$0x1]
    %v260 = vlaneseq
    %v261 = vshrl.u32 %v260, 7
    %v262 = vsub.s32 0, %v261
    %v263 = vrot.slane %v259, %v262
    %264 = vmatprep.subr.mxu0 0.0
    %265 = vmatpush1.msra.mxu0 %v159
    %266 = vmatprep.subr.mxu0 0.0
    %267 = vmatpush1.msra.mxu0 %v160
    %268 = vmatprep.subr.mxu0 0.0
    %269 = vmatpush1.msra.mxu0 %v161
    %270 = vmatprep.subr.mxu0 0.0
    %271 = vmatpush1.msra.mxu0 %v162
    %272 = vmatprep.subr.mxu0 0.0
    %273 = vmatpush1.msra.mxu0 0.0
    %274 = vmatprep.subr.mxu0 0.0
    %275 = vmatpush1.msra.mxu0 0.0
    %276 = vmatprep.subr.mxu0 0.0
    %277 = vmatpush1.msra.mxu0 0.0
    %278 = vmatprep.subr.mxu0 0.0
    %279 = vmatpush1.msra.mxu0 0.0
    %280 = vmatprep.subr.mxu0 0.0
    %281 = vmatpush1.msra.mxu0 0.0
    %282 = vmatprep.subr.mxu0 0.0
    %283 = vmatpush1.msra.mxu0 0.0
    %284 = vmatprep.subr.mxu0 0.0
    %285 = vmatpush1.msra.mxu0 0.0
    %286 = vmatprep.subr.mxu0 0.0
    %287 = vmatpush1.msra.mxu0 0.0
    %288 = vmatprep.subr.mxu0 0.0
    %289 = vmatpush1.msra.mxu0 0.0
    %290 = vmatprep.subr.mxu0 0.0
    %291 = vmatpush1.msra.mxu0 0.0
    %292 = vmatprep.subr.mxu0 0.0
    %293 = vmatpush1.msra.mxu0 0.0
    %294 = vmatprep.subr.mxu0 0.0
    %295 = vmatpush1.msra.mxu0 0.0
    %296 = vmatprep.subr.mxu0 0.0
    %297 = vmatpush1.msra.mxu0 0.0
    %298 = vmatprep.subr.mxu0 0.0
    %299 = vmatpush1.msra.mxu0 0.0
    %300 = vmatprep.subr.mxu0 0.0
    %301 = vmatpush1.msra.mxu0 0.0
    %302 = vmatprep.subr.mxu0 0.0
    %303 = vmatpush1.msra.mxu0 0.0
    %304 = vmatprep.subr.mxu0 0.0
    %305 = vmatpush1.msra.mxu0 0.0
    %306 = vmatprep.subr.mxu0 0.0
    %307 = vmatpush1.msra.mxu0 0.0
    %308 = vmatprep.subr.mxu0 0.0
    %309 = vmatpush1.msra.mxu0 0.0
    %310 = vmatprep.subr.mxu0 0.0
    %311 = vmatpush1.msra.mxu0 0.0
    %312 = vmatprep.subr.mxu0 0.0
    %313 = vmatpush1.msra.mxu0 0.0
    %314 = vmatprep.subr.mxu0 0.0
    %315 = vmatpush1.msra.mxu0 0.0
    %316 = vmatprep.subr.mxu0 0.0
    %317 = vmatpush1.msra.mxu0 0.0
    %318 = vmatprep.subr.mxu0 0.0
    %319 = vmatpush1.msra.mxu0 0.0
    %320 = vmatprep.subr.mxu0 0.0
    %321 = vmatpush1.msra.mxu0 0.0
    %322 = vmatprep.subr.mxu0 0.0
    %323 = vmatpush1.msra.mxu0 0.0
    %324 = vmatprep.subr.mxu0 0.0
    %325 = vmatpush1.msra.mxu0 0.0
    %326 = vmatprep.subr.mxu0 0.0
    %327 = vmatpush1.msra.mxu0 0.0
    %328 = vmatprep.mubr.f32.mxu0 0.0
    %329 = vmatmul.mubr.f32.gmra.mrb[0].mxu0 %v179
    %v330 = vpop.f32.mrb[0].mxu0
    %v331 = vadd.f32 %v263, %v330
    %v332 = vpop.f32.mrb[0].mxu0
    %333 = vmatprep.mubr.f32.mxu0 0.0
    %334 = vmatmul.mubr.f32.gmra.mrb[0].mxu0 %v182
    %v335 = vpop.f32.mrb[0].mxu0
    %v336 = vadd.f32 %v263, %v335
    %v337 = vpop.f32.mrb[0].mxu0
    %338 = vdwg.mxu0
    %v339 = vld [vmem:[#allocation7 + $0x4] sm:$0x1]
    %v340 = vlaneseq
    %v341 = vshrl.u32 %v340, 7
    %v342 = vsub.s32 0, %v341
    %v343 = vrot.slane %v339, %v342
    %344 = vmatprep.subr.mxu0 0.0
    %345 = vmatpush1.msra.mxu0 %v164
    %346 = vmatprep.subr.mxu0 0.0
    %347 = vmatpush1.msra.mxu0 %v165
    %348 = vmatprep.subr.mxu0 0.0
    %349 = vmatpush1.msra.mxu0 %v166
    %350 = vmatprep.subr.mxu0 0.0
    %351 = vmatpush1.msra.mxu0 %v167
    %352 = vmatprep.subr.mxu0 0.0
    %353 = vmatpush1.msra.mxu0 0.0
    %354 = vmatprep.subr.mxu0 0.0
    %355 = vmatpush1.msra.mxu0 0.0
    %356 = vmatprep.subr.mxu0 0.0
    %357 = vmatpush1.msra.mxu0 0.0
    %358 = vmatprep.subr.mxu0 0.0
    %359 = vmatpush1.msra.mxu0 0.0
    %360 = vmatprep.subr.mxu0 0.0
    %361 = vmatpush1.msra.mxu0 0.0
    %362 = vmatprep.subr.mxu0 0.0
    %363 = vmatpush1.msra.mxu0 0.0
    %364 = vmatprep.subr.mxu0 0.0
    %365 = vmatpush1.msra.mxu0 0.0
    %366 = vmatprep.subr.mxu0 0.0
    %367 = vmatpush1.msra.mxu0 0.0
    %368 = vmatprep.subr.mxu0 0.0
    %369 = vmatpush1.msra.mxu0 0.0
    %370 = vmatprep.subr.mxu0 0.0
    %371 = vmatpush1.msra.mxu0 0.0
    %372 = vmatprep.subr.mxu0 0.0
    %373 = vmatpush1.msra.mxu0 0.0
    %374 = vmatprep.subr.mxu0 0.0
    %375 = vmatpush1.msra.mxu0 0.0
    %376 = vmatprep.subr.mxu0 0.0
    %377 = vmatpush1.msra.mxu0 0.0
    %378 = vmatprep.subr.mxu0 0.0
    %379 = vmatpush1.msra.mxu0 0.0
    %380 = vmatprep.subr.mxu0 0.0
    %381 = vmatpush1.msra.mxu0 0.0
    %382 = vmatprep.subr.mxu0 0.0
    %383 = vmatpush1.msra.mxu0 0.0
    %384 = vmatprep.subr.mxu0 0.0
    %385 = vmatpush1.msra.mxu0 0.0
    %386 = vmatprep.subr.mxu0 0.0
    %387 = vmatpush1.msra.mxu0 0.0
    %388 = vmatprep.subr.mxu0 0.0
    %389 = vmatpush1.msra.mxu0 0.0
    %390 = vmatprep.subr.mxu0 0.0
    %391 = vmatpush1.msra.mxu0 0.0
    %392 = vmatprep.subr.mxu0 0.0
    %393 = vmatpush1.msra.mxu0 0.0
    %394 = vmatprep.subr.mxu0 0.0
    %395 = vmatpush1.msra.mxu0 0.0
    %396 = vmatprep.subr.mxu0 0.0
    %397 = vmatpush1.msra.mxu0 0.0
    %398 = vmatprep.subr.mxu0 0.0
    %399 = vmatpush1.msra.mxu0 0.0
    %400 = vmatprep.subr.mxu0 0.0
    %401 = vmatpush1.msra.mxu0 0.0
    %402 = vmatprep.subr.mxu0 0.0
    %403 = vmatpush1.msra.mxu0 0.0
    %404 = vmatprep.subr.mxu0 0.0
    %405 = vmatpush1.msra.mxu0 0.0
    %406 = vmatprep.subr.mxu0 0.0
    %407 = vmatpush1.msra.mxu0 0.0
    %408 = vmatprep.mubr.f32.mxu0 0.0
    %409 = vmatmul.mubr.f32.gmra.mrb[0].mxu0 %v179
    %v410 = vpop.f32.mrb[0].mxu0
    %v411 = vadd.f32 %v343, %v410
    %v412 = vpop.f32.mrb[0].mxu0
    %413 = vmatprep.mubr.f32.mxu0 0.0
    %414 = vmatmul.mubr.f32.gmra.mrb[0].mxu0 %v182
    %v415 = vpop.f32.mrb[0].mxu0
    %v416 = vadd.f32 %v343, %v415
    %v417 = vpop.f32.mrb[0].mxu0
    %418 = vdwg.mxu0
    %v419 = vld [vmem:[#allocation7 + $0x5] sm:$0x1]
    %v420 = vlaneseq
    %v421 = vshrl.u32 %v420, 7
    %v422 = vsub.s32 0, %v421
    %v423 = vrot.slane %v419, %v422
    %v424 = vadd.f32 %v146, %v423
    %v425 = vadd.f32 %v147, %v423
    %vm426 = vcmask 64512
    %v428 = vsel %vm426, %v251, 0
    %v431 = vsel %vm426, %v331, 0
    %433 = vmatprep.subr.mxu0 0.0
    %434 = vmatpush1.xpose.msra.mxu0 %v431
    %435 = vmatprep.subr.mxu0 0.0
    %436 = vmatpush1.xpose.msra.mxu0 0.0
    %437 = vmatprep.subr.mxu0 0.0
    %438 = vmatpush1.xpose.msra.mxu0 0.0
    %439 = vmatprep.subr.mxu0 0.0
    %440 = vmatpush1.xpose.msra.mxu0 0.0
    %441 = vmatprep.subr.mxu0 0.0
    %442 = vmatpush1.xpose.msra.mxu0 0.0
    %443 = vmatprep.subr.mxu0 0.0
    %444 = vmatpush1.xpose.msra.mxu0 0.0
    %445 = vmatprep.subr.mxu0 0.0
    %446 = vmatpush1.xpose.msra.mxu0 0.0
    %447 = vmatprep.subr.mxu0 0.0
    %448 = vmatpush1.xpose.msra.mxu0 0.0
    %449 = vmatprep.subr.mxu0 0.0
    %450 = vmatpush1.xpose.msra.mxu0 0.0
    %451 = vmatprep.subr.mxu0 0.0
    %452 = vmatpush1.xpose.msra.mxu0 0.0
    %453 = vmatprep.subr.mxu0 0.0
    %454 = vmatpush1.xpose.msra.mxu0 0.0
    %455 = vmatprep.subr.mxu0 0.0
    %456 = vmatpush1.xpose.msra.mxu0 0.0
    %457 = vmatprep.subr.mxu0 0.0
    %458 = vmatpush1.xpose.msra.mxu0 0.0
    %459 = vmatprep.subr.mxu0 0.0
    %460 = vmatpush1.xpose.msra.mxu0 0.0
    %461 = vmatprep.subr.mxu0 0.0
    %462 = vmatpush1.xpose.msra.mxu0 0.0
    %463 = vmatprep.subr.mxu0 0.0
    %464 = vmatpush1.xpose.msra.mxu0 0.0
    %465 = vmatprep.subr.mxu0 0.0
    %466 = vmatpush1.xpose.msra.mxu0 0.0
    %467 = vmatprep.subr.mxu0 0.0
    %468 = vmatpush1.xpose.msra.mxu0 0.0
    %469 = vmatprep.subr.mxu0 0.0
    %470 = vmatpush1.xpose.msra.mxu0 0.0
    %471 = vmatprep.subr.mxu0 0.0
    %472 = vmatpush1.xpose.msra.mxu0 0.0
    %473 = vmatprep.subr.mxu0 0.0
    %474 = vmatpush1.xpose.msra.mxu0 0.0
    %475 = vmatprep.subr.mxu0 0.0
    %476 = vmatpush1.xpose.msra.mxu0 0.0
    %477 = vmatprep.subr.mxu0 0.0
    %478 = vmatpush1.xpose.msra.mxu0 0.0
    %479 = vmatprep.subr.mxu0 0.0
    %480 = vmatpush1.xpose.msra.mxu0 0.0
    %481 = vmatprep.subr.mxu0 0.0
    %482 = vmatpush1.xpose.msra.mxu0 0.0
    %483 = vmatprep.subr.mxu0 0.0
    %484 = vmatpush1.xpose.msra.mxu0 0.0
    %485 = vmatprep.subr.mxu0 0.0
    %486 = vmatpush1.xpose.msra.mxu0 0.0
    %487 = vmatprep.subr.mxu0 0.0
    %488 = vmatpush1.xpose.msra.mxu0 0.0
    %489 = vmatprep.subr.mxu0 0.0
    %490 = vmatpush1.xpose.msra.mxu0 0.0
    %491 = vmatprep.subr.mxu0 0.0
    %492 = vmatpush1.xpose.msra.mxu0 0.0
    %493 = vmatprep.subr.mxu0 0.0
    %494 = vmatpush1.xpose.msra.mxu0 0.0
    %495 = vmatprep.subr.mxu0 0.0
    %496 = vmatpush1.xpose.msra.mxu0 0.0
    %497 = vmatprep.mubr.f32.mxu0 0.0
    %498 = vmatmul.mubr.f32.gmra.mrb[0].mxu0 %v428
    %v499 = vpop.f32.mrb[0].mxu0
    %v500 = vadd.f32 0.0, %v499
    %v501 = vpop.f32.mrb[0].mxu0
    %502 = vdwg.mxu0
    %v504 = vsel %vm426, %v256, 0
    %v507 = vsel %vm426, %v336, 0
    %509 = vmatprep.subr.mxu0 0.0
    %510 = vmatpush1.xpose.msra.mxu0 %v507
    %511 = vmatprep.subr.mxu0 0.0
    %512 = vmatpush1.xpose.msra.mxu0 0.0
    %513 = vmatprep.subr.mxu0 0.0
    %514 = vmatpush1.xpose.msra.mxu0 0.0
    %515 = vmatprep.subr.mxu0 0.0
    %516 = vmatpush1.xpose.msra.mxu0 0.0
    %517 = vmatprep.subr.mxu0 0.0
    %518 = vmatpush1.xpose.msra.mxu0 0.0
    %519 = vmatprep.subr.mxu0 0.0
    %520 = vmatpush1.xpose.msra.mxu0 0.0
    %521 = vmatprep.subr.mxu0 0.0
    %522 = vmatpush1.xpose.msra.mxu0 0.0
    %523 = vmatprep.subr.mxu0 0.0
    %524 = vmatpush1.xpose.msra.mxu0 0.0
    %525 = vmatprep.subr.mxu0 0.0
    %526 = vmatpush1.xpose.msra.mxu0 0.0
    %527 = vmatprep.subr.mxu0 0.0
    %528 = vmatpush1.xpose.msra.mxu0 0.0
    %529 = vmatprep.subr.mxu0 0.0
    %530 = vmatpush1.xpose.msra.mxu0 0.0
    %531 = vmatprep.subr.mxu0 0.0
    %532 = vmatpush1.xpose.msra.mxu0 0.0
    %533 = vmatprep.subr.mxu0 0.0
    %534 = vmatpush1.xpose.msra.mxu0 0.0
    %535 = vmatprep.subr.mxu0 0.0
    %536 = vmatpush1.xpose.msra.mxu0 0.0
    %537 = vmatprep.subr.mxu0 0.0
    %538 = vmatpush1.xpose.msra.mxu0 0.0
    %539 = vmatprep.subr.mxu0 0.0
    %540 = vmatpush1.xpose.msra.mxu0 0.0
    %541 = vmatprep.subr.mxu0 0.0
    %542 = vmatpush1.xpose.msra.mxu0 0.0
    %543 = vmatprep.subr.mxu0 0.0
    %544 = vmatpush1.xpose.msra.mxu0 0.0
    %545 = vmatprep.subr.mxu0 0.0
    %546 = vmatpush1.xpose.msra.mxu0 0.0
    %547 = vmatprep.subr.mxu0 0.0
    %548 = vmatpush1.xpose.msra.mxu0 0.0
    %549 = vmatprep.subr.mxu0 0.0
    %550 = vmatpush1.xpose.msra.mxu0 0.0
    %551 = vmatprep.subr.mxu0 0.0
    %552 = vmatpush1.xpose.msra.mxu0 0.0
    %553 = vmatprep.subr.mxu0 0.0
    %554 = vmatpush1.xpose.msra.mxu0 0.0
    %555 = vmatprep.subr.mxu0 0.0
    %556 = vmatpush1.xpose.msra.mxu0 0.0
    %557 = vmatprep.subr.mxu0 0.0
    %558 = vmatpush1.xpose.msra.mxu0 0.0
    %559 = vmatprep.subr.mxu0 0.0
    %560 = vmatpush1.xpose.msra.mxu0 0.0
    %561 = vmatprep.subr.mxu0 0.0
    %562 = vmatpush1.xpose.msra.mxu0 0.0
    %563 = vmatprep.subr.mxu0 0.0
    %564 = vmatpush1.xpose.msra.mxu0 0.0
    %565 = vmatprep.subr.mxu0 0.0
    %566 = vmatpush1.xpose.msra.mxu0 0.0
    %567 = vmatprep.subr.mxu0 0.0
    %568 = vmatpush1.xpose.msra.mxu0 0.0
    %569 = vmatprep.subr.mxu0 0.0
    %570 = vmatpush1.xpose.msra.mxu0 0.0
    %571 = vmatprep.subr.mxu0 0.0
    %572 = vmatpush1.xpose.msra.mxu0 0.0
    %573 = vmatprep.mubr.f32.mxu0 0.0
    %574 = vmatmul.mubr.f32.gmra.mrb[0].mxu0 %v504
    %v575 = vpop.f32.mrb[0].mxu0
    %v576 = vadd.f32 0.0, %v575
    %v577 = vpop.f32.mrb[0].mxu0
    %578 = vdwg.mxu0
    %v579 = vmul.f32 %v500, 0.35355338
    %v580 = vmul.f32 %v576, 0.35355338
    %v583 = vlaneseq
    %v584 = vshrl.u32 %v583, 7
    %v585 = vsub.s32 0, %v584
    %v586 = vrot.slane %v152, %v585
    %v587 = vlaneseq
    %v588 = vshrl.u32 %v587, 7
    %v589 = vsub.s32 0, %v588
    %v590 = vrot.slane %v153, %v589
    %v593 = vadd.f32 %v579, %v586
    %v594 = vadd.f32 %v580, %v590
    %v595 = vsel %vm426, %v593, -inf
    %596 = vmax.xlane.f32.xlu0 %v595
    %v597 = vpop.xlane.xlu0 %596
    %v598 = vsel %vm426, %v594, -inf
    %599 = vmax.xlane.f32.xlu0 %v598
    %v600 = vpop.xlane.xlu0 %599
    %v601 = vsub.f32 %v593, %v597
    %v602 = vsub.f32 %v594, %v600
    %v603 = vmul.f32 %v601, 1.442695
    %v604 = vpow.pop %v603
    %v605 = vmul.f32 %v602, 1.442695
    %v606 = vpow.pop %v605
    %v607 = vsel %vm426, %v604, 0.0
    %608 = vadd.xlane.f32.xlu0 %v607
    %v609 = vpop.xlane.xlu0 %608
    %v610 = vsel %vm426, %v606, 0.0
    %611 = vadd.xlane.f32.xlu0 %v610
    %v612 = vpop.xlane.xlu0 %611
    %v613 = vrcp.pop %v609
    %v614 = vrcp.pop %v612
    %v615 = vmul.f32 %v604, %v613
    %v616 = vmul.f32 %v606, %v614
    %v618 = vsel %vm426, %v615, 0
    %620 = vmatprep.subr.mxu0 0.0
    %621 = vmatpush1.msra.mxu0 %v411
    %622 = vmatprep.subr.mxu0 0.0
    %623 = vmatpush1.msra.mxu0 0.0
    %624 = vmatprep.subr.mxu0 0.0
    %625 = vmatpush1.msra.mxu0 0.0
    %626 = vmatprep.subr.mxu0 0.0
    %627 = vmatpush1.msra.mxu0 0.0
    %628 = vmatprep.subr.mxu0 0.0
    %629 = vmatpush1.msra.mxu0 0.0
    %630 = vmatprep.subr.mxu0 0.0
    %631 = vmatpush1.msra.mxu0 0.0
    %632 = vmatprep.subr.mxu0 0.0
    %633 = vmatpush1.msra.mxu0 0.0
    %634 = vmatprep.subr.mxu0 0.0
    %635 = vmatpush1.msra.mxu0 0.0
    %636 = vmatprep.subr.mxu0 0.0
    %637 = vmatpush1.msra.mxu0 0.0
    %638 = vmatprep.subr.mxu0 0.0
    %639 = vmatpush1.msra.mxu0 0.0
    %640 = vmatprep.subr.mxu0 0.0
    %641 = vmatpush1.msra.mxu0 0.0
    %642 = vmatprep.subr.mxu0 0.0
    %643 = vmatpush1.msra.mxu0 0.0
    %644 = vmatprep.subr.mxu0 0.0
    %645 = vmatpush1.msra.mxu0 0.0
    %646 = vmatprep.subr.mxu0 0.0
    %647 = vmatpush1.msra.mxu0 0.0
    %648 = vmatprep.subr.mxu0 0.0
    %649 = vmatpush1.msra.mxu0 0.0
    %650 = vmatprep.subr.mxu0 0.0
    %651 = vmatpush1.msra.mxu0 0.0
    %652 = vmatprep.subr.mxu0 0.0
    %653 = vmatpush1.msra.mxu0 0.0
    %654 = vmatprep.subr.mxu0 0.0
    %655 = vmatpush1.msra.mxu0 0.0
    %656 = vmatprep.subr.mxu0 0.0
    %657 = vmatpush1.msra.mxu0 0.0
    %658 = vmatprep.subr.mxu0 0.0
    %659 = vmatpush1.msra.mxu0 0.0
    %660 = vmatprep.subr.mxu0 0.0
    %661 = vmatpush1.msra.mxu0 0.0
    %662 = vmatprep.subr.mxu0 0.0
    %663 = vmatpush1.msra.mxu0 0.0
    %664 = vmatprep.subr.mxu0 0.0
    %665 = vmatpush1.msra.mxu0 0.0
    %666 = vmatprep.subr.mxu0 0.0
    %667 = vmatpush1.msra.mxu0 0.0
    %668 = vmatprep.subr.mxu0 0.0
    %669 = vmatpush1.msra.mxu0 0.0
    %670 = vmatprep.subr.mxu0 0.0
    %671 = vmatpush1.msra.mxu0 0.0
    %672 = vmatprep.subr.mxu0 0.0
    %673 = vmatpush1.msra.mxu0 0.0
    %674 = vmatprep.subr.mxu0 0.0
    %675 = vmatpush1.msra.mxu0 0.0
    %676 = vmatprep.subr.mxu0 0.0
    %677 = vmatpush1.msra.mxu0 0.0
    %678 = vmatprep.subr.mxu0 0.0
    %679 = vmatpush1.msra.mxu0 0.0
    %680 = vmatprep.subr.mxu0 0.0
    %681 = vmatpush1.msra.mxu0 0.0
    %682 = vmatprep.subr.mxu0 0.0
    %683 = vmatpush1.msra.mxu0 0.0
    %684 = vmatprep.mubr.f32.mxu0 0.0
    %685 = vmatmul.mubr.f32.gmra.mrb[0].mxu0 %v618
    %v686 = vpop.f32.mrb[0].mxu0
    %v687 = vadd.f32 0.0, %v686
    %v688 = vpop.f32.mrb[0].mxu0
    %689 = vdwg.mxu0
    %v691 = vsel %vm426, %v616, 0
    %693 = vmatprep.subr.mxu0 0.0
    %694 = vmatpush1.msra.mxu0 %v416
    %695 = vmatprep.subr.mxu0 0.0
    %696 = vmatpush1.msra.mxu0 0.0
    %697 = vmatprep.subr.mxu0 0.0
    %698 = vmatpush1.msra.mxu0 0.0
    %699 = vmatprep.subr.mxu0 0.0
    %700 = vmatpush1.msra.mxu0 0.0
    %701 = vmatprep.subr.mxu0 0.0
    %702 = vmatpush1.msra.mxu0 0.0
    %703 = vmatprep.subr.mxu0 0.0
    %704 = vmatpush1.msra.mxu0 0.0
    %705 = vmatprep.subr.mxu0 0.0
    %706 = vmatpush1.msra.mxu0 0.0
    %707 = vmatprep.subr.mxu0 0.0
    %708 = vmatpush1.msra.mxu0 0.0
    %709 = vmatprep.subr.mxu0 0.0
    %710 = vmatpush1.msra.mxu0 0.0
    %711 = vmatprep.subr.mxu0 0.0
    %712 = vmatpush1.msra.mxu0 0.0
    %713 = vmatprep.subr.mxu0 0.0
    %714 = vmatpush1.msra.mxu0 0.0
    %715 = vmatprep.subr.mxu0 0.0
    %716 = vmatpush1.msra.mxu0 0.0
    %717 = vmatprep.subr.mxu0 0.0
    %718 = vmatpush1.msra.mxu0 0.0
    %719 = vmatprep.subr.mxu0 0.0
    %720 = vmatpush1.msra.mxu0 0.0
    %721 = vmatprep.subr.mxu0 0.0
    %722 = vmatpush1.msra.mxu0 0.0
    %723 = vmatprep.subr.mxu0 0.0
    %724 = vmatpush1.msra.mxu0 0.0
    %725 = vmatprep.subr.mxu0 0.0
    %726 = vmatpush1.msra.mxu0 0.0
    %727 = vmatprep.subr.mxu0 0.0
    %728 = vmatpush1.msra.mxu0 0.0
    %729 = vmatprep.subr.mxu0 0.0
    %730 = vmatpush1.msra.mxu0 0.0
    %731 = vmatprep.subr.mxu0 0.0
    %732 = vmatpush1.msra.mxu0 0.0
    %733 = vmatprep.subr.mxu0 0.0
    %734 = vmatpush1.msra.mxu0 0.0
    %735 = vmatprep.subr.mxu0 0.0
    %736 = vmatpush1.msra.mxu0 0.0
    %737 = vmatprep.subr.mxu0 0.0
    %738 = vmatpush1.msra.mxu0 0.0
    %739 = vmatprep.subr.mxu0 0.0
    %740 = vmatpush1.msra.mxu0 0.0
    %741 = vmatprep.subr.mxu0 0.0
    %742 = vmatpush1.msra.mxu0 0.0
    %743 = vmatprep.subr.mxu0 0.0
    %744 = vmatpush1.msra.mxu0 0.0
    %745 = vmatprep.subr.mxu0 0.0
    %746 = vmatpush1.msra.mxu0 0.0
    %747 = vmatprep.subr.mxu0 0.0
    %748 = vmatpush1.msra.mxu0 0.0
    %749 = vmatprep.subr.mxu0 0.0
    %750 = vmatpush1.msra.mxu0 0.0
    %751 = vmatprep.subr.mxu0 0.0
    %752 = vmatpush1.msra.mxu0 0.0
    %753 = vmatprep.subr.mxu0 0.0
    %754 = vmatpush1.msra.mxu0 0.0
    %755 = vmatprep.subr.mxu0 0.0
    %756 = vmatpush1.msra.mxu0 0.0
    %757 = vmatprep.mubr.f32.mxu0 0.0
    %758 = vmatmul.mubr.f32.gmra.mrb[0].mxu0 %v691
    %v759 = vpop.f32.mrb[0].mxu0
    %v760 = vadd.f32 0.0, %v759
    %v761 = vpop.f32.mrb[0].mxu0
    %762 = vdwg.mxu0
    %v764 = vsel %vm426, %v687, 0
    %v767 = vsel %vm426, %v760, 0
    %769 = vmatprep.subr.mxu0 0.0
    %770 = vmatpush1.msra.mxu0 %v169
    %771 = vmatprep.subr.mxu0 0.0
    %772 = vmatpush1.msra.mxu0 0.0
    %773 = vmatprep.subr.mxu0 0.0
    %774 = vmatpush1.msra.mxu0 0.0
    %775 = vmatprep.subr.mxu0 0.0
    %776 = vmatpush1.msra.mxu0 0.0
    %777 = vmatprep.subr.mxu0 0.0
    %778 = vmatpush1.msra.mxu0 0.0
    %779 = vmatprep.subr.mxu0 0.0
    %780 = vmatpush1.msra.mxu0 0.0
    %781 = vmatprep.subr.mxu0 0.0
    %782 = vmatpush1.msra.mxu0 0.0
    %783 = vmatprep.subr.mxu0 0.0
    %784 = vmatpush1.msra.mxu0 0.0
    %785 = vmatprep.subr.mxu0 0.0
    %786 = vmatpush1.msra.mxu0 0.0
    %787 = vmatprep.subr.mxu0 0.0
    %788 = vmatpush1.msra.mxu0 0.0
    %789 = vmatprep.subr.mxu0 0.0
    %790 = vmatpush1.msra.mxu0 0.0
    %791 = vmatprep.subr.mxu0 0.0
    %792 = vmatpush1.msra.mxu0 0.0
    %793 = vmatprep.subr.mxu0 0.0
    %794 = vmatpush1.msra.mxu0 0.0
    %795 = vmatprep.subr.mxu0 0.0
    %796 = vmatpush1.msra.mxu0 0.0
    %797 = vmatprep.subr.mxu0 0.0
    %798 = vmatpush1.msra.mxu0 0.0
    %799 = vmatprep.subr.mxu0 0.0
    %800 = vmatpush1.msra.mxu0 0.0
    %801 = vmatprep.subr.mxu0 0.0
    %802 = vmatpush1.msra.mxu0 0.0
    %803 = vmatprep.subr.mxu0 0.0
    %804 = vmatpush1.msra.mxu0 0.0
    %805 = vmatprep.subr.mxu0 0.0
    %806 = vmatpush1.msra.mxu0 0.0
    %807 = vmatprep.subr.mxu0 0.0
    %808 = vmatpush1.msra.mxu0 0.0
    %809 = vmatprep.subr.mxu0 0.0
    %810 = vmatpush1.msra.mxu0 0.0
    %811 = vmatprep.subr.mxu0 0.0
    %812 = vmatpush1.msra.mxu0 0.0
    %813 = vmatprep.subr.mxu0 0.0
    %814 = vmatpush1.msra.mxu0 0.0
    %815 = vmatprep.subr.mxu0 0.0
    %816 = vmatpush1.msra.mxu0 0.0
    %817 = vmatprep.subr.mxu0 0.0
    %818 = vmatpush1.msra.mxu0 0.0
    %819 = vmatprep.subr.mxu0 0.0
    %820 = vmatpush1.msra.mxu0 0.0
    %821 = vmatprep.subr.mxu0 0.0
    %822 = vmatpush1.msra.mxu0 0.0
    %823 = vmatprep.subr.mxu0 0.0
    %824 = vmatpush1.msra.mxu0 0.0
    %825 = vmatprep.subr.mxu0 0.0
    %826 = vmatpush1.msra.mxu0 0.0
    %827 = vmatprep.subr.mxu0 0.0
    %828 = vmatpush1.msra.mxu0 0.0
    %829 = vmatprep.subr.mxu0 0.0
    %830 = vmatpush1.msra.mxu0 0.0
    %831 = vmatprep.subr.mxu0 0.0
    %832 = vmatpush1.msra.mxu0 0.0
    %833 = vmatprep.mubr.f32.mxu0 0.0
    %834 = vmatmul.mubr.f32.gmra.mrb[0].mxu0 %v764
    %v835 = vpop.f32.mrb[0].mxu0
    %v836 = vadd.f32 0.0, %v835
    %v837 = vpop.f32.mrb[0].mxu0
    %838 = vmatprep.mubr.f32.mxu0 0.0
    %839 = vmatmul.mubr.f32.gmra.mrb[0].mxu0 %v767
    %v840 = vpop.f32.mrb[0].mxu0
    %v841 = vadd.f32 0.0, %v840
    %v842 = vpop.f32.mrb[0].mxu0
    %843 = vdwg.mxu0
    %v844 = vadd.f32 %v424, %v836
    %v845 = vadd.f32 %v425, %v841
    %846 = vrot.lane.b32.xlu0 %v251, 120
    %v847 = vpop.permute.xlu0 %846
    %848 = vrot.lane.b32.xlu0 %v331, 120
    %v849 = vpop.permute.xlu0 %848
    %v850 = vsel %vm426, %v847, 0
    %v852 = vsel %vm426, %v849, 0
    %854 = vmatprep.subr.mxu0 0.0
    %855 = vmatpush1.xpose.msra.mxu0 %v852
    %856 = vmatprep.subr.mxu0 0.0
    %857 = vmatpush1.xpose.msra.mxu0 0.0
    %858 = vmatprep.subr.mxu0 0.0
    %859 = vmatpush1.xpose.msra.mxu0 0.0
    %860 = vmatprep.subr.mxu0 0.0
    %861 = vmatpush1.xpose.msra.mxu0 0.0
    %862 = vmatprep.subr.mxu0 0.0
    %863 = vmatpush1.xpose.msra.mxu0 0.0
    %864 = vmatprep.subr.mxu0 0.0
    %865 = vmatpush1.xpose.msra.mxu0 0.0
    %866 = vmatprep.subr.mxu0 0.0
    %867 = vmatpush1.xpose.msra.mxu0 0.0
    %868 = vmatprep.subr.mxu0 0.0
    %869 = vmatpush1.xpose.msra.mxu0 0.0
    %870 = vmatprep.subr.mxu0 0.0
    %871 = vmatpush1.xpose.msra.mxu0 0.0
    %872 = vmatprep.subr.mxu0 0.0
    %873 = vmatpush1.xpose.msra.mxu0 0.0
    %874 = vmatprep.subr.mxu0 0.0
    %875 = vmatpush1.xpose.msra.mxu0 0.0
    %876 = vmatprep.subr.mxu0 0.0
    %877 = vmatpush1.xpose.msra.mxu0 0.0
    %878 = vmatprep.subr.mxu0 0.0
    %879 = vmatpush1.xpose.msra.mxu0 0.0
    %880 = vmatprep.subr.mxu0 0.0
    %881 = vmatpush1.xpose.msra.mxu0 0.0
    %882 = vmatprep.subr.mxu0 0.0
    %883 = vmatpush1.xpose.msra.mxu0 0.0
    %884 = vmatprep.subr.mxu0 0.0
    %885 = vmatpush1.xpose.msra.mxu0 0.0
    %886 = vmatprep.subr.mxu0 0.0
    %887 = vmatpush1.xpose.msra.mxu0 0.0
    %888 = vmatprep.subr.mxu0 0.0
    %889 = vmatpush1.xpose.msra.mxu0 0.0
    %890 = vmatprep.subr.mxu0 0.0
    %891 = vmatpush1.xpose.msra.mxu0 0.0
    %892 = vmatprep.subr.mxu0 0.0
    %893 = vmatpush1.xpose.msra.mxu0 0.0
    %894 = vmatprep.subr.mxu0 0.0
    %895 = vmatpush1.xpose.msra.mxu0 0.0
    %896 = vmatprep.subr.mxu0 0.0
    %897 = vmatpush1.xpose.msra.mxu0 0.0
    %898 = vmatprep.subr.mxu0 0.0
    %899 = vmatpush1.xpose.msra.mxu0 0.0
    %900 = vmatprep.subr.mxu0 0.0
    %901 = vmatpush1.xpose.msra.mxu0 0.0
    %902 = vmatprep.subr.mxu0 0.0
    %903 = vmatpush1.xpose.msra.mxu0 0.0
    %904 = vmatprep.subr.mxu0 0.0
    %905 = vmatpush1.xpose.msra.mxu0 0.0
    %906 = vmatprep.subr.mxu0 0.0
    %907 = vmatpush1.xpose.msra.mxu0 0.0
    %908 = vmatprep.subr.mxu0 0.0
    %909 = vmatpush1.xpose.msra.mxu0 0.0
    %910 = vmatprep.subr.mxu0 0.0
    %911 = vmatpush1.xpose.msra.mxu0 0.0
    %912 = vmatprep.subr.mxu0 0.0
    %913 = vmatpush1.xpose.msra.mxu0 0.0
    %914 = vmatprep.subr.mxu0 0.0
    %915 = vmatpush1.xpose.msra.mxu0 0.0
    %916 = vmatprep.subr.mxu0 0.0
    %917 = vmatpush1.xpose.msra.mxu0 0.0
    %918 = vmatprep.mubr.f32.mxu0 0.0
    %919 = vmatmul.mubr.f32.gmra.mrb[0].mxu0 %v850
    %v920 = vpop.f32.mrb[0].mxu0
    %v921 = vadd.f32 0.0, %v920
    %v922 = vpop.f32.mrb[0].mxu0
    %923 = vdwg.mxu0
    %924 = vrot.lane.b32.xlu0 %v256, 120
    %v925 = vpop.permute.xlu0 %924
    %926 = vrot.lane.b32.xlu0 %v336, 120
    %v927 = vpop.permute.xlu0 %926
    %v928 = vsel %vm426, %v925, 0
    %v930 = vsel %vm426, %v927, 0
    %932 = vmatprep.subr.mxu0 0.0
    %933 = vmatpush1.xpose.msra.mxu0 %v930
    %934 = vmatprep.subr.mxu0 0.0
    %935 = vmatpush1.xpose.msra.mxu0 0.0
    %936 = vmatprep.subr.mxu0 0.0
    %937 = vmatpush1.xpose.msra.mxu0 0.0
    %938 = vmatprep.subr.mxu0 0.0
    %939 = vmatpush1.xpose.msra.mxu0 0.0
    %940 = vmatprep.subr.mxu0 0.0
    %941 = vmatpush1.xpose.msra.mxu0 0.0
    %942 = vmatprep.subr.mxu0 0.0
    %943 = vmatpush1.xpose.msra.mxu0 0.0
    %944 = vmatprep.subr.mxu0 0.0
    %945 = vmatpush1.xpose.msra.mxu0 0.0
    %946 = vmatprep.subr.mxu0 0.0
    %947 = vmatpush1.xpose.msra.mxu0 0.0
    %948 = vmatprep.subr.mxu0 0.0
    %949 = vmatpush1.xpose.msra.mxu0 0.0
    %950 = vmatprep.subr.mxu0 0.0
    %951 = vmatpush1.xpose.msra.mxu0 0.0
    %952 = vmatprep.subr.mxu0 0.0
    %953 = vmatpush1.xpose.msra.mxu0 0.0
    %954 = vmatprep.subr.mxu0 0.0
    %955 = vmatpush1.xpose.msra.mxu0 0.0
    %956 = vmatprep.subr.mxu0 0.0
    %957 = vmatpush1.xpose.msra.mxu0 0.0
    %958 = vmatprep.subr.mxu0 0.0
    %959 = vmatpush1.xpose.msra.mxu0 0.0
    %960 = vmatprep.subr.mxu0 0.0
    %961 = vmatpush1.xpose.msra.mxu0 0.0
    %962 = vmatprep.subr.mxu0 0.0
    %963 = vmatpush1.xpose.msra.mxu0 0.0
    %964 = vmatprep.subr.mxu0 0.0
    %965 = vmatpush1.xpose.msra.mxu0 0.0
    %966 = vmatprep.subr.mxu0 0.0
    %967 = vmatpush1.xpose.msra.mxu0 0.0
    %968 = vmatprep.subr.mxu0 0.0
    %969 = vmatpush1.xpose.msra.mxu0 0.0
    %970 = vmatprep.subr.mxu0 0.0
    %971 = vmatpush1.xpose.msra.mxu0 0.0
    %972 = vmatprep.subr.mxu0 0.0
    %973 = vmatpush1.xpose.msra.mxu0 0.0
    %974 = vmatprep.subr.mxu0 0.0
    %975 = vmatpush1.xpose.msra.mxu0 0.0
    %976 = vmatprep.subr.mxu0 0.0
    %977 = vmatpush1.xpose.msra.mxu0 0.0
    %978 = vmatprep.subr.mxu0 0.0
    %979 = vmatpush1.xpose.msra.mxu0 0.0
    %980 = vmatprep.subr.mxu0 0.0
    %981 = vmatpush1.xpose.msra.mxu0 0.0
    %982 = vmatprep.subr.mxu0 0.0
    %983 = vmatpush1.xpose.msra.mxu0 0.0
    %984 = vmatprep.subr.mxu0 0.0
    %985 = vmatpush1.xpose.msra.mxu0 0.0
    %986 = vmatprep.subr.mxu0 0.0
    %987 = vmatpush1.xpose.msra.mxu0 0.0
    %988 = vmatprep.subr.mxu0 0.0
    %989 = vmatpush1.xpose.msra.mxu0 0.0
    %990 = vmatprep.subr.mxu0 0.0
    %991 = vmatpush1.xpose.msra.mxu0 0.0
    %992 = vmatprep.subr.mxu0 0.0
    %993 = vmatpush1.xpose.msra.mxu0 0.0
    %994 = vmatprep.subr.mxu0 0.0
    %995 = vmatpush1.xpose.msra.mxu0 0.0
    %996 = vmatprep.mubr.f32.mxu0 0.0
    %997 = vmatmul.mubr.f32.gmra.mrb[0].mxu0 %v928
    %v998 = vpop.f32.mrb[0].mxu0
    %v999 = vadd.f32 0.0, %v998
    %v1000 = vpop.f32.mrb[0].mxu0
    %1001 = vdwg.mxu0
    %v1002 = vmul.f32 %v921, 0.35355338
    %v1003 = vmul.f32 %v999, 0.35355338
    %v1004 = vadd.f32 %v1002, %v586
    %v1005 = vadd.f32 %v1003, %v590
    %v1006 = vsel %vm426, %v1004, -inf
    %1007 = vmax.xlane.f32.xlu0 %v1006
    %v1008 = vpop.xlane.xlu0 %1007
    %v1009 = vsel %vm426, %v1005, -inf
    %1010 = vmax.xlane.f32.xlu0 %v1009
    %v1011 = vpop.xlane.xlu0 %1010
    %v1012 = vsub.f32 %v1004, %v1008
    %v1013 = vsub.f32 %v1005, %v1011
    %v1014 = vmul.f32 %v1012, 1.442695
    %v1015 = vpow.pop %v1014
    %v1016 = vmul.f32 %v1013, 1.442695
    %v1017 = vpow.pop %v1016
    %v1018 = vsel %vm426, %v1015, 0.0
    %1019 = vadd.xlane.f32.xlu0 %v1018
    %v1020 = vpop.xlane.xlu0 %1019
    %v1021 = vsel %vm426, %v1017, 0.0
    %1022 = vadd.xlane.f32.xlu0 %v1021
    %v1023 = vpop.xlane.xlu0 %1022
    %v1024 = vrcp.pop %v1020
    %v1025 = vrcp.pop %v1023
    %v1026 = vmul.f32 %v1015, %v1024
    %v1027 = vmul.f32 %v1017, %v1025
    %1029 = vrot.lane.b32.xlu0 %v411, 120
    %v1030 = vpop.permute.xlu0 %1029
    %v1033 = vsel %vm426, %v1026, 0
    %1035 = vmatprep.subr.mxu0 0.0
    %1036 = vmatpush1.msra.mxu0 %v1030
    %1037 = vmatprep.subr.mxu0 0.0
    %1038 = vmatpush1.msra.mxu0 0.0
    %1039 = vmatprep.subr.mxu0 0.0
    %1040 = vmatpush1.msra.mxu0 0.0
    %1041 = vmatprep.subr.mxu0 0.0
    %1042 = vmatpush1.msra.mxu0 0.0
    %1043 = vmatprep.subr.mxu0 0.0
    %1044 = vmatpush1.msra.mxu0 0.0
    %1045 = vmatprep.subr.mxu0 0.0
    %1046 = vmatpush1.msra.mxu0 0.0
    %1047 = vmatprep.subr.mxu0 0.0
    %1048 = vmatpush1.msra.mxu0 0.0
    %1049 = vmatprep.subr.mxu0 0.0
    %1050 = vmatpush1.msra.mxu0 0.0
    %1051 = vmatprep.subr.mxu0 0.0
    %1052 = vmatpush1.msra.mxu0 0.0
    %1053 = vmatprep.subr.mxu0 0.0
    %1054 = vmatpush1.msra.mxu0 0.0
    %1055 = vmatprep.subr.mxu0 0.0
    %1056 = vmatpush1.msra.mxu0 0.0
    %1057 = vmatprep.subr.mxu0 0.0
    %1058 = vmatpush1.msra.mxu0 0.0
    %1059 = vmatprep.subr.mxu0 0.0
    %1060 = vmatpush1.msra.mxu0 0.0
    %1061 = vmatprep.subr.mxu0 0.0
    %1062 = vmatpush1.msra.mxu0 0.0
    %1063 = vmatprep.subr.mxu0 0.0
    %1064 = vmatpush1.msra.mxu0 0.0
    %1065 = vmatprep.subr.mxu0 0.0
    %1066 = vmatpush1.msra.mxu0 0.0
    %1067 = vmatprep.subr.mxu0 0.0
    %1068 = vmatpush1.msra.mxu0 0.0
    %1069 = vmatprep.subr.mxu0 0.0
    %1070 = vmatpush1.msra.mxu0 0.0
    %1071 = vmatprep.subr.mxu0 0.0
    %1072 = vmatpush1.msra.mxu0 0.0
    %1073 = vmatprep.subr.mxu0 0.0
    %1074 = vmatpush1.msra.mxu0 0.0
    %1075 = vmatprep.subr.mxu0 0.0
    %1076 = vmatpush1.msra.mxu0 0.0
    %1077 = vmatprep.subr.mxu0 0.0
    %1078 = vmatpush1.msra.mxu0 0.0
    %1079 = vmatprep.subr.mxu0 0.0
    %1080 = vmatpush1.msra.mxu0 0.0
    %1081 = vmatprep.subr.mxu0 0.0
    %1082 = vmatpush1.msra.mxu0 0.0
    %1083 = vmatprep.subr.mxu0 0.0
    %1084 = vmatpush1.msra.mxu0 0.0
    %1085 = vmatprep.subr.mxu0 0.0
    %1086 = vmatpush1.msra.mxu0 0.0
    %1087 = vmatprep.subr.mxu0 0.0
    %1088 = vmatpush1.msra.mxu0 0.0
    %1089 = vmatprep.subr.mxu0 0.0
    %1090 = vmatpush1.msra.mxu0 0.0
    %1091 = vmatprep.subr.mxu0 0.0
    %1092 = vmatpush1.msra.mxu0 0.0
    %1093 = vmatprep.subr.mxu0 0.0
    %1094 = vmatpush1.msra.mxu0 0.0
    %1095 = vmatprep.subr.mxu0 0.0
    %1096 = vmatpush1.msra.mxu0 0.0
    %1097 = vmatprep.subr.mxu0 0.0
    %1098 = vmatpush1.msra.mxu0 0.0
    %1099 = vmatprep.mubr.f32.mxu0 0.0
    %1100 = vmatmul.mubr.f32.gmra.mrb[0].mxu0 %v1033
    %v1101 = vpop.f32.mrb[0].mxu0
    %v1102 = vadd.f32 0.0, %v1101
    %v1103 = vpop.f32.mrb[0].mxu0
    %1104 = vdwg.mxu0
    %1106 = vrot.lane.b32.xlu0 %v416, 120
    %v1107 = vpop.permute.xlu0 %1106
    %v1110 = vsel %vm426, %v1027, 0
    %1112 = vmatprep.subr.mxu0 0.0
    %1113 = vmatpush1.msra.mxu0 %v1107
    %1114 = vmatprep.subr.mxu0 0.0
    %1115 = vmatpush1.msra.mxu0 0.0
    %1116 = vmatprep.subr.mxu0 0.0
    %1117 = vmatpush1.msra.mxu0 0.0
    %1118 = vmatprep.subr.mxu0 0.0
    %1119 = vmatpush1.msra.mxu0 0.0
    %1120 = vmatprep.subr.mxu0 0.0
    %1121 = vmatpush1.msra.mxu0 0.0
    %1122 = vmatprep.subr.mxu0 0.0
    %1123 = vmatpush1.msra.mxu0 0.0
    %1124 = vmatprep.subr.mxu0 0.0
    %1125 = vmatpush1.msra.mxu0 0.0
    %1126 = vmatprep.subr.mxu0 0.0
    %1127 = vmatpush1.msra.mxu0 0.0
    %1128 = vmatprep.subr.mxu0 0.0
    %1129 = vmatpush1.msra.mxu0 0.0
    %1130 = vmatprep.subr.mxu0 0.0
    %1131 = vmatpush1.msra.mxu0 0.0
    %1132 = vmatprep.subr.mxu0 0.0
    %1133 = vmatpush1.msra.mxu0 0.0
    %1134 = vmatprep.subr.mxu0 0.0
    %1135 = vmatpush1.msra.mxu0 0.0
    %1136 = vmatprep.subr.mxu0 0.0
    %1137 = vmatpush1.msra.mxu0 0.0
    %1138 = vmatprep.subr.mxu0 0.0
    %1139 = vmatpush1.msra.mxu0 0.0
    %1140 = vmatprep.subr.mxu0 0.0
    %1141 = vmatpush1.msra.mxu0 0.0
    %1142 = vmatprep.subr.mxu0 0.0
    %1143 = vmatpush1.msra.mxu0 0.0
    %1144 = vmatprep.subr.mxu0 0.0
    %1145 = vmatpush1.msra.mxu0 0.0
    %1146 = vmatprep.subr.mxu0 0.0
    %1147 = vmatpush1.msra.mxu0 0.0
    %1148 = vmatprep.subr.mxu0 0.0
    %1149 = vmatpush1.msra.mxu0 0.0
    %1150 = vmatprep.subr.mxu0 0.0
    %1151 = vmatpush1.msra.mxu0 0.0
    %1152 = vmatprep.subr.mxu0 0.0
    %1153 = vmatpush1.msra.mxu0 0.0
    %1154 = vmatprep.subr.mxu0 0.0
    %1155 = vmatpush1.msra.mxu0 0.0
    %1156 = vmatprep.subr.mxu0 0.0
    %1157 = vmatpush1.msra.mxu0 0.0
    %1158 = vmatprep.subr.mxu0 0.0
    %1159 = vmatpush1.msra.mxu0 0.0
    %1160 = vmatprep.subr.mxu0 0.0
    %1161 = vmatpush1.msra.mxu0 0.0
    %1162 = vmatprep.subr.mxu0 0.0
    %1163 = vmatpush1.msra.mxu0 0.0
    %1164 = vmatprep.subr.mxu0 0.0
    %1165 = vmatpush1.msra.mxu0 0.0
    %1166 = vmatprep.subr.mxu0 0.0
    %1167 = vmatpush1.msra.mxu0 0.0
    %1168 = vmatprep.subr.mxu0 0.0
    %1169 = vmatpush1.msra.mxu0 0.0
    %1170 = vmatprep.subr.mxu0 0.0
    %1171 = vmatpush1.msra.mxu0 0.0
    %1172 = vmatprep.subr.mxu0 0.0
    %1173 = vmatpush1.msra.mxu0 0.0
    %1174 = vmatprep.subr.mxu0 0.0
    %1175 = vmatpush1.msra.mxu0 0.0
    %1176 = vmatprep.mubr.f32.mxu0 0.0
    %1177 = vmatmul.mubr.f32.gmra.mrb[0].mxu0 %v1110
    %v1178 = vpop.f32.mrb[0].mxu0
    %v1179 = vadd.f32 0.0, %v1178
    %v1180 = vpop.f32.mrb[0].mxu0
    %1181 = vdwg.mxu0
    %v1183 = vsel %vm426, %v1102, 0
    %v1186 = vsel %vm426, %v1179, 0
    %1188 = vmatprep.subr.mxu0 0.0
    %1189 = vmatpush1.msra.mxu0 %v170
    %1190 = vmatprep.subr.mxu0 0.0
    %1191 = vmatpush1.msra.mxu0 0.0
    %1192 = vmatprep.subr.mxu0 0.0
    %1193 = vmatpush1.msra.mxu0 0.0
    %1194 = vmatprep.subr.mxu0 0.0
    %1195 = vmatpush1.msra.mxu0 0.0
    %1196 = vmatprep.subr.mxu0 0.0
    %1197 = vmatpush1.msra.mxu0 0.0
    %1198 = vmatprep.subr.mxu0 0.0
    %1199 = vmatpush1.msra.mxu0 0.0
    %1200 = vmatprep.subr.mxu0 0.0
    %1201 = vmatpush1.msra.mxu0 0.0
    %1202 = vmatprep.subr.mxu0 0.0
    %1203 = vmatpush1.msra.mxu0 0.0
    %1204 = vmatprep.subr.mxu0 0.0
    %1205 = vmatpush1.msra.mxu0 0.0
    %1206 = vmatprep.subr.mxu0 0.0
    %1207 = vmatpush1.msra.mxu0 0.0
    %1208 = vmatprep.subr.mxu0 0.0
    %1209 = vmatpush1.msra.mxu0 0.0
    %1210 = vmatprep.subr.mxu0 0.0
    %1211 = vmatpush1.msra.mxu0 0.0
    %1212 = vmatprep.subr.mxu0 0.0
    %1213 = vmatpush1.msra.mxu0 0.0
    %1214 = vmatprep.subr.mxu0 0.0
    %1215 = vmatpush1.msra.mxu0 0.0
    %1216 = vmatprep.subr.mxu0 0.0
    %1217 = vmatpush1.msra.mxu0 0.0
    %1218 = vmatprep.subr.mxu0 0.0
    %1219 = vmatpush1.msra.mxu0 0.0
    %1220 = vmatprep.subr.mxu0 0.0
    %1221 = vmatpush1.msra.mxu0 0.0
    %1222 = vmatprep.subr.mxu0 0.0
    %1223 = vmatpush1.msra.mxu0 0.0
    %1224 = vmatprep.subr.mxu0 0.0
    %1225 = vmatpush1.msra.mxu0 0.0
    %1226 = vmatprep.subr.mxu0 0.0
    %1227 = vmatpush1.msra.mxu0 0.0
    %1228 = vmatprep.subr.mxu0 0.0
    %1229 = vmatpush1.msra.mxu0 0.0
    %1230 = vmatprep.subr.mxu0 0.0
    %1231 = vmatpush1.msra.mxu0 0.0
    %1232 = vmatprep.subr.mxu0 0.0
    %1233 = vmatpush1.msra.mxu0 0.0
    %1234 = vmatprep.subr.mxu0 0.0
    %1235 = vmatpush1.msra.mxu0 0.0
    %1236 = vmatprep.subr.mxu0 0.0
    %1237 = vmatpush1.msra.mxu0 0.0
    %1238 = vmatprep.subr.mxu0 0.0
    %1239 = vmatpush1.msra.mxu0 0.0
    %1240 = vmatprep.subr.mxu0 0.0
    %1241 = vmatpush1.msra.mxu0 0.0
    %1242 = vmatprep.subr.mxu0 0.0
    %1243 = vmatpush1.msra.mxu0 0.0
    %1244 = vmatprep.subr.mxu0 0.0
    %1245 = vmatpush1.msra.mxu0 0.0
    %1246 = vmatprep.subr.mxu0 0.0
    %1247 = vmatpush1.msra.mxu0 0.0
    %1248 = vmatprep.subr.mxu0 0.0
    %1249 = vmatpush1.msra.mxu0 0.0
    %1250 = vmatprep.subr.mxu0 0.0
    %1251 = vmatpush1.msra.mxu0 0.0
    %1252 = vmatprep.mubr.f32.mxu0 0.0
    %1253 = vmatmul.mubr.f32.gmra.mrb[0].mxu0 %v1183
    %v1254 = vpop.f32.mrb[0].mxu0
    %v1255 = vadd.f32 0.0, %v1254
    %v1256 = vpop.f32.mrb[0].mxu0
    %1257 = vmatprep.mubr.f32.mxu0 0.0
    %1258 = vmatmul.mubr.f32.gmra.mrb[0].mxu0 %v1186
    %v1259 = vpop.f32.mrb[0].mxu0
    %v1260 = vadd.f32 0.0, %v1259
    %v1261 = vpop.f32.mrb[0].mxu0
    %1262 = vdwg.mxu0
    %v1263 = vadd.f32 %v844, %v1255
    %v1264 = vadd.f32 %v845, %v1260
    %1265 = vrot.lane.b32.xlu0 %v251, 112
    %v1266 = vpop.permute.xlu0 %1265
    %1267 = vrot.lane.b32.xlu0 %v331, 112
    %v1268 = vpop.permute.xlu0 %1267
    %v1269 = vsel %vm426, %v1266, 0
    %v1271 = vsel %vm426, %v1268, 0
    %1273 = vmatprep.subr.mxu0 0.0
    %1274 = vmatpush1.xpose.msra.mxu0 %v1271
    %1275 = vmatprep.subr.mxu0 0.0
    %1276 = vmatpush1.xpose.msra.mxu0 0.0
    %1277 = vmatprep.subr.mxu0 0.0
    %1278 = vmatpush1.xpose.msra.mxu0 0.0
    %1279 = vmatprep.subr.mxu0 0.0
    %1280 = vmatpush1.xpose.msra.mxu0 0.0
    %1281 = vmatprep.subr.mxu0 0.0
    %1282 = vmatpush1.xpose.msra.mxu0 0.0
    %1283 = vmatprep.subr.mxu0 0.0
    %1284 = vmatpush1.xpose.msra.mxu0 0.0
    %1285 = vmatprep.subr.mxu0 0.0
    %1286 = vmatpush1.xpose.msra.mxu0 0.0
    %1287 = vmatprep.subr.mxu0 0.0
    %1288 = vmatpush1.xpose.msra.mxu0 0.0
    %1289 = vmatprep.subr.mxu0 0.0
    %1290 = vmatpush1.xpose.msra.mxu0 0.0
    %1291 = vmatprep.subr.mxu0 0.0
    %1292 = vmatpush1.xpose.msra.mxu0 0.0
    %1293 = vmatprep.subr.mxu0 0.0
    %1294 = vmatpush1.xpose.msra.mxu0 0.0
    %1295 = vmatprep.subr.mxu0 0.0
    %1296 = vmatpush1.xpose.msra.mxu0 0.0
    %1297 = vmatprep.subr.mxu0 0.0
    %1298 = vmatpush1.xpose.msra.mxu0 0.0
    %1299 = vmatprep.subr.mxu0 0.0
    %1300 = vmatpush1.xpose.msra.mxu0 0.0
    %1301 = vmatprep.subr.mxu0 0.0
    %1302 = vmatpush1.xpose.msra.mxu0 0.0
    %1303 = vmatprep.subr.mxu0 0.0
    %1304 = vmatpush1.xpose.msra.mxu0 0.0
    %1305 = vmatprep.subr.mxu0 0.0
    %1306 = vmatpush1.xpose.msra.mxu0 0.0
    %1307 = vmatprep.subr.mxu0 0.0
    %1308 = vmatpush1.xpose.msra.mxu0 0.0
    %1309 = vmatprep.subr.mxu0 0.0
    %1310 = vmatpush1.xpose.msra.mxu0 0.0
    %1311 = vmatprep.subr.mxu0 0.0
    %1312 = vmatpush1.xpose.msra.mxu0 0.0
    %1313 = vmatprep.subr.mxu0 0.0
    %1314 = vmatpush1.xpose.msra.mxu0 0.0
    %1315 = vmatprep.subr.mxu0 0.0
    %1316 = vmatpush1.xpose.msra.mxu0 0.0
    %1317 = vmatprep.subr.mxu0 0.0
    %1318 = vmatpush1.xpose.msra.mxu0 0.0
    %1319 = vmatprep.subr.mxu0 0.0
    %1320 = vmatpush1.xpose.msra.mxu0 0.0
    %1321 = vmatprep.subr.mxu0 0.0
    %1322 = vmatpush1.xpose.msra.mxu0 0.0
    %1323 = vmatprep.subr.mxu0 0.0
    %1324 = vmatpush1.xpose.msra.mxu0 0.0
    %1325 = vmatprep.subr.mxu0 0.0
    %1326 = vmatpush1.xpose.msra.mxu0 0.0
    %1327 = vmatprep.subr.mxu0 0.0
    %1328 = vmatpush1.xpose.msra.mxu0 0.0
    %1329 = vmatprep.subr.mxu0 0.0
    %1330 = vmatpush1.xpose.msra.mxu0 0.0
    %1331 = vmatprep.subr.mxu0 0.0
    %1332 = vmatpush1.xpose.msra.mxu0 0.0
    %1333 = vmatprep.subr.mxu0 0.0
    %1334 = vmatpush1.xpose.msra.mxu0 0.0
    %1335 = vmatprep.subr.mxu0 0.0
    %1336 = vmatpush1.xpose.msra.mxu0 0.0
    %1337 = vmatprep.mubr.f32.mxu0 0.0
    %1338 = vmatmul.mubr.f32.gmra.mrb[0].mxu0 %v1269
    %v1339 = vpop.f32.mrb[0].mxu0
    %v1340 = vadd.f32 0.0, %v1339
    %v1341 = vpop.f32.mrb[0].mxu0
    %1342 = vdwg.mxu0
    %1343 = vrot.lane.b32.xlu0 %v256, 112
    %v1344 = vpop.permute.xlu0 %1343
    %1345 = vrot.lane.b32.xlu0 %v336, 112
    %v1346 = vpop.permute.xlu0 %1345
    %v1347 = vsel %vm426, %v1344, 0
    %v1349 = vsel %vm426, %v1346, 0
    %1351 = vmatprep.subr.mxu0 0.0
    %1352 = vmatpush1.xpose.msra.mxu0 %v1349
    %1353 = vmatprep.subr.mxu0 0.0
    %1354 = vmatpush1.xpose.msra.mxu0 0.0
    %1355 = vmatprep.subr.mxu0 0.0
    %1356 = vmatpush1.xpose.msra.mxu0 0.0
    %1357 = vmatprep.subr.mxu0 0.0
    %1358 = vmatpush1.xpose.msra.mxu0 0.0
    %1359 = vmatprep.subr.mxu0 0.0
    %1360 = vmatpush1.xpose.msra.mxu0 0.0
    %1361 = vmatprep.subr.mxu0 0.0
    %1362 = vmatpush1.xpose.msra.mxu0 0.0
    %1363 = vmatprep.subr.mxu0 0.0
    %1364 = vmatpush1.xpose.msra.mxu0 0.0
    %1365 = vmatprep.subr.mxu0 0.0
    %1366 = vmatpush1.xpose.msra.mxu0 0.0
    %1367 = vmatprep.subr.mxu0 0.0
    %1368 = vmatpush1.xpose.msra.mxu0 0.0
    %1369 = vmatprep.subr.mxu0 0.0
    %1370 = vmatpush1.xpose.msra.mxu0 0.0
    %1371 = vmatprep.subr.mxu0 0.0
    %1372 = vmatpush1.xpose.msra.mxu0 0.0
    %1373 = vmatprep.subr.mxu0 0.0
    %1374 = vmatpush1.xpose.msra.mxu0 0.0
    %1375 = vmatprep.subr.mxu0 0.0
    %1376 = vmatpush1.xpose.msra.mxu0 0.0
    %1377 = vmatprep.subr.mxu0 0.0
    %1378 = vmatpush1.xpose.msra.mxu0 0.0
    %1379 = vmatprep.subr.mxu0 0.0
    %1380 = vmatpush1.xpose.msra.mxu0 0.0
    %1381 = vmatprep.subr.mxu0 0.0
    %1382 = vmatpush1.xpose.msra.mxu0 0.0
    %1383 = vmatprep.subr.mxu0 0.0
    %1384 = vmatpush1.xpose.msra.mxu0 0.0
    %1385 = vmatprep.subr.mxu0 0.0
    %1386 = vmatpush1.xpose.msra.mxu0 0.0
    %1387 = vmatprep.subr.mxu0 0.0
    %1388 = vmatpush1.xpose.msra.mxu0 0.0
    %1389 = vmatprep.subr.mxu0 0.0
    %1390 = vmatpush1.xpose.msra.mxu0 0.0
    %1391 = vmatprep.subr.mxu0 0.0
    %1392 = vmatpush1.xpose.msra.mxu0 0.0
    %1393 = vmatprep.subr.mxu0 0.0
    %1394 = vmatpush1.xpose.msra.mxu0 0.0
    %1395 = vmatprep.subr.mxu0 0.0
    %1396 = vmatpush1.xpose.msra.mxu0 0.0
    %1397 = vmatprep.subr.mxu0 0.0
    %1398 = vmatpush1.xpose.msra.mxu0 0.0
    %1399 = vmatprep.subr.mxu0 0.0
    %1400 = vmatpush1.xpose.msra.mxu0 0.0
    %1401 = vmatprep.subr.mxu0 0.0
    %1402 = vmatpush1.xpose.msra.mxu0 0.0
    %1403 = vmatprep.subr.mxu0 0.0
    %1404 = vmatpush1.xpose.msra.mxu0 0.0
    %1405 = vmatprep.subr.mxu0 0.0
    %1406 = vmatpush1.xpose.msra.mxu0 0.0
    %1407 = vmatprep.subr.mxu0 0.0
    %1408 = vmatpush1.xpose.msra.mxu0 0.0
    %1409 = vmatprep.subr.mxu0 0.0
    %1410 = vmatpush1.xpose.msra.mxu0 0.0
    %1411 = vmatprep.subr.mxu0 0.0
    %1412 = vmatpush1.xpose.msra.mxu0 0.0
    %1413 = vmatprep.subr.mxu0 0.0
    %1414 = vmatpush1.xpose.msra.mxu0 0.0
    %1415 = vmatprep.mubr.f32.mxu0 0.0
    %1416 = vmatmul.mubr.f32.gmra.mrb[0].mxu0 %v1347
    %v1417 = vpop.f32.mrb[0].mxu0
    %v1418 = vadd.f32 0.0, %v1417
    %v1419 = vpop.f32.mrb[0].mxu0
    %1420 = vdwg.mxu0
    %v1421 = vmul.f32 %v1340, 0.35355338
    %v1422 = vmul.f32 %v1418, 0.35355338
    %v1423 = vadd.f32 %v1421, %v586
    %v1424 = vadd.f32 %v1422, %v590
    %v1425 = vsel %vm426, %v1423, -inf
    %1426 = vmax.xlane.f32.xlu0 %v1425
    %v1427 = vpop.xlane.xlu0 %1426
    %v1428 = vsel %vm426, %v1424, -inf
    %1429 = vmax.xlane.f32.xlu0 %v1428
    %v1430 = vpop.xlane.xlu0 %1429
    %v1431 = vsub.f32 %v1423, %v1427
    %v1432 = vsub.f32 %v1424, %v1430
    %v1433 = vmul.f32 %v1431, 1.442695
    %v1434 = vpow.pop %v1433
    %v1435 = vmul.f32 %v1432, 1.442695
    %v1436 = vpow.pop %v1435
    %v1437 = vsel %vm426, %v1434, 0.0
    %1438 = vadd.xlane.f32.xlu0 %v1437
    %v1439 = vpop.xlane.xlu0 %1438
    %v1440 = vsel %vm426, %v1436, 0.0
    %1441 = vadd.xlane.f32.xlu0 %v1440
    %v1442 = vpop.xlane.xlu0 %1441
    %v1443 = vrcp.pop %v1439
    %v1444 = vrcp.pop %v1442
    %v1445 = vmul.f32 %v1434, %v1443
    %v1446 = vmul.f32 %v1436, %v1444
    %1447 = vrot.lane.b32.xlu0 %v411, 112
    %v1448 = vpop.permute.xlu0 %1447
    %v1451 = vsel %vm426, %v1445, 0
    %1453 = vmatprep.subr.mxu0 0.0
    %1454 = vmatpush1.msra.mxu0 %v1448
    %1455 = vmatprep.subr.mxu0 0.0
    %1456 = vmatpush1.msra.mxu0 0.0
    %1457 = vmatprep.subr.mxu0 0.0
    %1458 = vmatpush1.msra.mxu0 0.0
    %1459 = vmatprep.subr.mxu0 0.0
    %1460 = vmatpush1.msra.mxu0 0.0
    %1461 = vmatprep.subr.mxu0 0.0
    %1462 = vmatpush1.msra.mxu0 0.0
    %1463 = vmatprep.subr.mxu0 0.0
    %1464 = vmatpush1.msra.mxu0 0.0
    %1465 = vmatprep.subr.mxu0 0.0
    %1466 = vmatpush1.msra.mxu0 0.0
    %1467 = vmatprep.subr.mxu0 0.0
    %1468 = vmatpush1.msra.mxu0 0.0
    %1469 = vmatprep.subr.mxu0 0.0
    %1470 = vmatpush1.msra.mxu0 0.0
    %1471 = vmatprep.subr.mxu0 0.0
    %1472 = vmatpush1.msra.mxu0 0.0
    %1473 = vmatprep.subr.mxu0 0.0
    %1474 = vmatpush1.msra.mxu0 0.0
    %1475 = vmatprep.subr.mxu0 0.0
    %1476 = vmatpush1.msra.mxu0 0.0
    %1477 = vmatprep.subr.mxu0 0.0
    %1478 = vmatpush1.msra.mxu0 0.0
    %1479 = vmatprep.subr.mxu0 0.0
    %1480 = vmatpush1.msra.mxu0 0.0
    %1481 = vmatprep.subr.mxu0 0.0
    %1482 = vmatpush1.msra.mxu0 0.0
    %1483 = vmatprep.subr.mxu0 0.0
    %1484 = vmatpush1.msra.mxu0 0.0
    %1485 = vmatprep.subr.mxu0 0.0
    %1486 = vmatpush1.msra.mxu0 0.0
    %1487 = vmatprep.subr.mxu0 0.0
    %1488 = vmatpush1.msra.mxu0 0.0
    %1489 = vmatprep.subr.mxu0 0.0
    %1490 = vmatpush1.msra.mxu0 0.0
    %1491 = vmatprep.subr.mxu0 0.0
    %1492 = vmatpush1.msra.mxu0 0.0
    %1493 = vmatprep.subr.mxu0 0.0
    %1494 = vmatpush1.msra.mxu0 0.0
    %1495 = vmatprep.subr.mxu0 0.0
    %1496 = vmatpush1.msra.mxu0 0.0
    %1497 = vmatprep.subr.mxu0 0.0
    %1498 = vmatpush1.msra.mxu0 0.0
    %1499 = vmatprep.subr.mxu0 0.0
    %1500 = vmatpush1.msra.mxu0 0.0
    %1501 = vmatprep.subr.mxu0 0.0
    %1502 = vmatpush1.msra.mxu0 0.0
    %1503 = vmatprep.subr.mxu0 0.0
    %1504 = vmatpush1.msra.mxu0 0.0
    %1505 = vmatprep.subr.mxu0 0.0
    %1506 = vmatpush1.msra.mxu0 0.0
    %1507 = vmatprep.subr.mxu0 0.0
    %1508 = vmatpush1.msra.mxu0 0.0
    %1509 = vmatprep.subr.mxu0 0.0
    %1510 = vmatpush1.msra.mxu0 0.0
    %1511 = vmatprep.subr.mxu0 0.0
    %1512 = vmatpush1.msra.mxu0 0.0
    %1513 = vmatprep.subr.mxu0 0.0
    %1514 = vmatpush1.msra.mxu0 0.0
    %1515 = vmatprep.subr.mxu0 0.0
    %1516 = vmatpush1.msra.mxu0 0.0
    %1517 = vmatprep.mubr.f32.mxu0 0.0
    %1518 = vmatmul.mubr.f32.gmra.mrb[0].mxu0 %v1451
    %v1519 = vpop.f32.mrb[0].mxu0
    %v1520 = vadd.f32 0.0, %v1519
    %v1521 = vpop.f32.mrb[0].mxu0
    %1522 = vdwg.mxu0
    %1523 = vrot.lane.b32.xlu0 %v416, 112
    %v1524 = vpop.permute.xlu0 %1523
    %v1527 = vsel %vm426, %v1446, 0
    %1529 = vmatprep.subr.mxu0 0.0
    %1530 = vmatpush1.msra.mxu0 %v1524
    %1531 = vmatprep.subr.mxu0 0.0
    %1532 = vmatpush1.msra.mxu0 0.0
    %1533 = vmatprep.subr.mxu0 0.0
    %1534 = vmatpush1.msra.mxu0 0.0
    %1535 = vmatprep.subr.mxu0 0.0
    %1536 = vmatpush1.msra.mxu0 0.0
    %1537 = vmatprep.subr.mxu0 0.0
    %1538 = vmatpush1.msra.mxu0 0.0
    %1539 = vmatprep.subr.mxu0 0.0
    %1540 = vmatpush1.msra.mxu0 0.0
    %1541 = vmatprep.subr.mxu0 0.0
    %1542 = vmatpush1.msra.mxu0 0.0
    %1543 = vmatprep.subr.mxu0 0.0
    %1544 = vmatpush1.msra.mxu0 0.0
    %1545 = vmatprep.subr.mxu0 0.0
    %1546 = vmatpush1.msra.mxu0 0.0
    %1547 = vmatprep.subr.mxu0 0.0
    %1548 = vmatpush1.msra.mxu0 0.0
    %1549 = vmatprep.subr.mxu0 0.0
    %1550 = vmatpush1.msra.mxu0 0.0
    %1551 = vmatprep.subr.mxu0 0.0
    %1552 = vmatpush1.msra.mxu0 0.0
    %1553 = vmatprep.subr.mxu0 0.0
    %1554 = vmatpush1.msra.mxu0 0.0
    %1555 = vmatprep.subr.mxu0 0.0
    %1556 = vmatpush1.msra.mxu0 0.0
    %1557 = vmatprep.subr.mxu0 0.0
    %1558 = vmatpush1.msra.mxu0 0.0
    %1559 = vmatprep.subr.mxu0 0.0
    %1560 = vmatpush1.msra.mxu0 0.0
    %1561 = vmatprep.subr.mxu0 0.0
    %1562 = vmatpush1.msra.mxu0 0.0
    %1563 = vmatprep.subr.mxu0 0.0
    %1564 = vmatpush1.msra.mxu0 0.0
    %1565 = vmatprep.subr.mxu0 0.0
    %1566 = vmatpush1.msra.mxu0 0.0
    %1567 = vmatprep.subr.mxu0 0.0
    %1568 = vmatpush1.msra.mxu0 0.0
    %1569 = vmatprep.subr.mxu0 0.0
    %1570 = vmatpush1.msra.mxu0 0.0
    %1571 = vmatprep.subr.mxu0 0.0
    %1572 = vmatpush1.msra.mxu0 0.0
    %1573 = vmatprep.subr.mxu0 0.0
    %1574 = vmatpush1.msra.mxu0 0.0
    %1575 = vmatprep.subr.mxu0 0.0
    %1576 = vmatpush1.msra.mxu0 0.0
    %1577 = vmatprep.subr.mxu0 0.0
    %1578 = vmatpush1.msra.mxu0 0.0
    %1579 = vmatprep.subr.mxu0 0.0
    %1580 = vmatpush1.msra.mxu0 0.0
    %1581 = vmatprep.subr.mxu0 0.0
    %1582 = vmatpush1.msra.mxu0 0.0
    %1583 = vmatprep.subr.mxu0 0.0
    %1584 = vmatpush1.msra.mxu0 0.0
    %1585 = vmatprep.subr.mxu0 0.0
    %1586 = vmatpush1.msra.mxu0 0.0
    %1587 = vmatprep.subr.mxu0 0.0
    %1588 = vmatpush1.msra.mxu0 0.0
    %1589 = vmatprep.subr.mxu0 0.0
    %1590 = vmatpush1.msra.mxu0 0.0
    %1591 = vmatprep.subr.mxu0 0.0
    %1592 = vmatpush1.msra.mxu0 0.0
    %1593 = vmatprep.mubr.f32.mxu0 0.0
    %1594 = vmatmul.mubr.f32.gmra.mrb[0].mxu0 %v1527
    %v1595 = vpop.f32.mrb[0].mxu0
    %v1596 = vadd.f32 0.0, %v1595
    %v1597 = vpop.f32.mrb[0].mxu0
    %1598 = vdwg.mxu0
    %v1600 = vsel %vm426, %v1520, 0
    %v1603 = vsel %vm426, %v1596, 0
    %1605 = vmatprep.subr.mxu0 0.0
    %1606 = vmatpush1.msra.mxu0 %v171
    %1607 = vmatprep.subr.mxu0 0.0
    %1608 = vmatpush1.msra.mxu0 0.0
    %1609 = vmatprep.subr.mxu0 0.0
    %1610 = vmatpush1.msra.mxu0 0.0
    %1611 = vmatprep.subr.mxu0 0.0
    %1612 = vmatpush1.msra.mxu0 0.0
    %1613 = vmatprep.subr.mxu0 0.0
    %1614 = vmatpush1.msra.mxu0 0.0
    %1615 = vmatprep.subr.mxu0 0.0
    %1616 = vmatpush1.msra.mxu0 0.0
    %1617 = vmatprep.subr.mxu0 0.0
    %1618 = vmatpush1.msra.mxu0 0.0
    %1619 = vmatprep.subr.mxu0 0.0
    %1620 = vmatpush1.msra.mxu0 0.0
    %1621 = vmatprep.subr.mxu0 0.0
    %1622 = vmatpush1.msra.mxu0 0.0
    %1623 = vmatprep.subr.mxu0 0.0
    %1624 = vmatpush1.msra.mxu0 0.0
    %1625 = vmatprep.subr.mxu0 0.0
    %1626 = vmatpush1.msra.mxu0 0.0
    %1627 = vmatprep.subr.mxu0 0.0
    %1628 = vmatpush1.msra.mxu0 0.0
    %1629 = vmatprep.subr.mxu0 0.0
    %1630 = vmatpush1.msra.mxu0 0.0
    %1631 = vmatprep.subr.mxu0 0.0
    %1632 = vmatpush1.msra.mxu0 0.0
    %1633 = vmatprep.subr.mxu0 0.0
    %1634 = vmatpush1.msra.mxu0 0.0
    %1635 = vmatprep.subr.mxu0 0.0
    %1636 = vmatpush1.msra.mxu0 0.0
    %1637 = vmatprep.subr.mxu0 0.0
    %1638 = vmatpush1.msra.mxu0 0.0
    %1639 = vmatprep.subr.mxu0 0.0
    %1640 = vmatpush1.msra.mxu0 0.0
    %1641 = vmatprep.subr.mxu0 0.0
    %1642 = vmatpush1.msra.mxu0 0.0
    %1643 = vmatprep.subr.mxu0 0.0
    %1644 = vmatpush1.msra.mxu0 0.0
    %1645 = vmatprep.subr.mxu0 0.0
    %1646 = vmatpush1.msra.mxu0 0.0
    %1647 = vmatprep.subr.mxu0 0.0
    %1648 = vmatpush1.msra.mxu0 0.0
    %1649 = vmatprep.subr.mxu0 0.0
    %1650 = vmatpush1.msra.mxu0 0.0
    %1651 = vmatprep.subr.mxu0 0.0
    %1652 = vmatpush1.msra.mxu0 0.0
    %1653 = vmatprep.subr.mxu0 0.0
    %1654 = vmatpush1.msra.mxu0 0.0
    %1655 = vmatprep.subr.mxu0 0.0
    %1656 = vmatpush1.msra.mxu0 0.0
    %1657 = vmatprep.subr.mxu0 0.0
    %1658 = vmatpush1.msra.mxu0 0.0
    %1659 = vmatprep.subr.mxu0 0.0
    %1660 = vmatpush1.msra.mxu0 0.0
    %1661 = vmatprep.subr.mxu0 0.0
    %1662 = vmatpush1.msra.mxu0 0.0
    %1663 = vmatprep.subr.mxu0 0.0
    %1664 = vmatpush1.msra.mxu0 0.0
    %1665 = vmatprep.subr.mxu0 0.0
    %1666 = vmatpush1.msra.mxu0 0.0
    %1667 = vmatprep.subr.mxu0 0.0
    %1668 = vmatpush1.msra.mxu0 0.0
    %1669 = vmatprep.mubr.f32.mxu0 0.0
    %1670 = vmatmul.mubr.f32.gmra.mrb[0].mxu0 %v1600
    %v1671 = vpop.f32.mrb[0].mxu0
    %v1672 = vadd.f32 0.0, %v1671
    %v1673 = vpop.f32.mrb[0].mxu0
    %1674 = vmatprep.mubr.f32.mxu0 0.0
    %1675 = vmatmul.mubr.f32.gmra.mrb[0].mxu0 %v1603
    %v1676 = vpop.f32.mrb[0].mxu0
    %v1677 = vadd.f32 0.0, %v1676
    %v1678 = vpop.f32.mrb[0].mxu0
    %1679 = vdwg.mxu0
    %v1680 = vadd.f32 %v1263, %v1672
    %v1681 = vadd.f32 %v1264, %v1677
    %1682 = vrot.lane.b32.xlu0 %v251, 104
    %v1683 = vpop.permute.xlu0 %1682
    %1684 = vrot.lane.b32.xlu0 %v331, 104
    %v1685 = vpop.permute.xlu0 %1684
    %v1686 = vsel %vm426, %v1683, 0
    %v1688 = vsel %vm426, %v1685, 0
    %1690 = vmatprep.subr.mxu0 0.0
    %1691 = vmatpush1.xpose.msra.mxu0 %v1688
    %1692 = vmatprep.subr.mxu0 0.0
    %1693 = vmatpush1.xpose.msra.mxu0 0.0
    %1694 = vmatprep.subr.mxu0 0.0
    %1695 = vmatpush1.xpose.msra.mxu0 0.0
    %1696 = vmatprep.subr.mxu0 0.0
    %1697 = vmatpush1.xpose.msra.mxu0 0.0
    %1698 = vmatprep.subr.mxu0 0.0
    %1699 = vmatpush1.xpose.msra.mxu0 0.0
    %1700 = vmatprep.subr.mxu0 0.0
    %1701 = vmatpush1.xpose.msra.mxu0 0.0
    %1702 = vmatprep.subr.mxu0 0.0
    %1703 = vmatpush1.xpose.msra.mxu0 0.0
    %1704 = vmatprep.subr.mxu0 0.0
    %1705 = vmatpush1.xpose.msra.mxu0 0.0
    %1706 = vmatprep.subr.mxu0 0.0
    %1707 = vmatpush1.xpose.msra.mxu0 0.0
    %1708 = vmatprep.subr.mxu0 0.0
    %1709 = vmatpush1.xpose.msra.mxu0 0.0
    %1710 = vmatprep.subr.mxu0 0.0
    %1711 = vmatpush1.xpose.msra.mxu0 0.0
    %1712 = vmatprep.subr.mxu0 0.0
    %1713 = vmatpush1.xpose.msra.mxu0 0.0
    %1714 = vmatprep.subr.mxu0 0.0
    %1715 = vmatpush1.xpose.msra.mxu0 0.0
    %1716 = vmatprep.subr.mxu0 0.0
    %1717 = vmatpush1.xpose.msra.mxu0 0.0
    %1718 = vmatprep.subr.mxu0 0.0
    %1719 = vmatpush1.xpose.msra.mxu0 0.0
    %1720 = vmatprep.subr.mxu0 0.0
    %1721 = vmatpush1.xpose.msra.mxu0 0.0
    %1722 = vmatprep.subr.mxu0 0.0
    %1723 = vmatpush1.xpose.msra.mxu0 0.0
    %1724 = vmatprep.subr.mxu0 0.0
    %1725 = vmatpush1.xpose.msra.mxu0 0.0
    %1726 = vmatprep.subr.mxu0 0.0
    %1727 = vmatpush1.xpose.msra.mxu0 0.0
    %1728 = vmatprep.subr.mxu0 0.0
    %1729 = vmatpush1.xpose.msra.mxu0 0.0
    %1730 = vmatprep.subr.mxu0 0.0
    %1731 = vmatpush1.xpose.msra.mxu0 0.0
    %1732 = vmatprep.subr.mxu0 0.0
    %1733 = vmatpush1.xpose.msra.mxu0 0.0
    %1734 = vmatprep.subr.mxu0 0.0
    %1735 = vmatpush1.xpose.msra.mxu0 0.0
    %1736 = vmatprep.subr.mxu0 0.0
    %1737 = vmatpush1.xpose.msra.mxu0 0.0
    %1738 = vmatprep.subr.mxu0 0.0
    %1739 = vmatpush1.xpose.msra.mxu0 0.0
    %1740 = vmatprep.subr.mxu0 0.0
    %1741 = vmatpush1.xpose.msra.mxu0 0.0
    %1742 = vmatprep.subr.mxu0 0.0
    %1743 = vmatpush1.xpose.msra.mxu0 0.0
    %1744 = vmatprep.subr.mxu0 0.0
    %1745 = vmatpush1.xpose.msra.mxu0 0.0
    %1746 = vmatprep.subr.mxu0 0.0
    %1747 = vmatpush1.xpose.msra.mxu0 0.0
    %1748 = vmatprep.subr.mxu0 0.0
    %1749 = vmatpush1.xpose.msra.mxu0 0.0
    %1750 = vmatprep.subr.mxu0 0.0
    %1751 = vmatpush1.xpose.msra.mxu0 0.0
    %1752 = vmatprep.subr.mxu0 0.0
    %1753 = vmatpush1.xpose.msra.mxu0 0.0
    %1754 = vmatprep.mubr.f32.mxu0 0.0
    %1755 = vmatmul.mubr.f32.gmra.mrb[0].mxu0 %v1686
    %v1756 = vpop.f32.mrb[0].mxu0
    %v1757 = vadd.f32 0.0, %v1756
    %v1758 = vpop.f32.mrb[0].mxu0
    %1759 = vdwg.mxu0
    %1760 = vrot.lane.b32.xlu0 %v256, 104
    %v1761 = vpop.permute.xlu0 %1760
    %1762 = vrot.lane.b32.xlu0 %v336, 104
    %v1763 = vpop.permute.xlu0 %1762
    %v1764 = vsel %vm426, %v1761, 0
    %v1766 = vsel %vm426, %v1763, 0
    %1768 = vmatprep.subr.mxu0 0.0
    %1769 = vmatpush1.xpose.msra.mxu0 %v1766
    %1770 = vmatprep.subr.mxu0 0.0
    %1771 = vmatpush1.xpose.msra.mxu0 0.0
    %1772 = vmatprep.subr.mxu0 0.0
    %1773 = vmatpush1.xpose.msra.mxu0 0.0
    %1774 = vmatprep.subr.mxu0 0.0
    %1775 = vmatpush1.xpose.msra.mxu0 0.0
    %1776 = vmatprep.subr.mxu0 0.0
    %1777 = vmatpush1.xpose.msra.mxu0 0.0
    %1778 = vmatprep.subr.mxu0 0.0
    %1779 = vmatpush1.xpose.msra.mxu0 0.0
    %1780 = vmatprep.subr.mxu0 0.0
    %1781 = vmatpush1.xpose.msra.mxu0 0.0
    %1782 = vmatprep.subr.mxu0 0.0
    %1783 = vmatpush1.xpose.msra.mxu0 0.0
    %1784 = vmatprep.subr.mxu0 0.0
    %1785 = vmatpush1.xpose.msra.mxu0 0.0
    %1786 = vmatprep.subr.mxu0 0.0
    %1787 = vmatpush1.xpose.msra.mxu0 0.0
    %1788 = vmatprep.subr.mxu0 0.0
    %1789 = vmatpush1.xpose.msra.mxu0 0.0
    %1790 = vmatprep.subr.mxu0 0.0
    %1791 = vmatpush1.xpose.msra.mxu0 0.0
    %1792 = vmatprep.subr.mxu0 0.0
    %1793 = vmatpush1.xpose.msra.mxu0 0.0
    %1794 = vmatprep.subr.mxu0 0.0
    %1795 = vmatpush1.xpose.msra.mxu0 0.0
    %1796 = vmatprep.subr.mxu0 0.0
    %1797 = vmatpush1.xpose.msra.mxu0 0.0
    %1798 = vmatprep.subr.mxu0 0.0
    %1799 = vmatpush1.xpose.msra.mxu0 0.0
    %1800 = vmatprep.subr.mxu0 0.0
    %1801 = vmatpush1.xpose.msra.mxu0 0.0
    %1802 = vmatprep.subr.mxu0 0.0
    %1803 = vmatpush1.xpose.msra.mxu0 0.0
    %1804 = vmatprep.subr.mxu0 0.0
    %1805 = vmatpush1.xpose.msra.mxu0 0.0
    %1806 = vmatprep.subr.mxu0 0.0
    %1807 = vmatpush1.xpose.msra.mxu0 0.0
    %1808 = vmatprep.subr.mxu0 0.0
    %1809 = vmatpush1.xpose.msra.mxu0 0.0
    %1810 = vmatprep.subr.mxu0 0.0
    %1811 = vmatpush1.xpose.msra.mxu0 0.0
    %1812 = vmatprep.subr.mxu0 0.0
    %1813 = vmatpush1.xpose.msra.mxu0 0.0
    %1814 = vmatprep.subr.mxu0 0.0
    %1815 = vmatpush1.xpose.msra.mxu0 0.0
    %1816 = vmatprep.subr.mxu0 0.0
    %1817 = vmatpush1.xpose.msra.mxu0 0.0
    %1818 = vmatprep.subr.mxu0 0.0
    %1819 = vmatpush1.xpose.msra.mxu0 0.0
    %1820 = vmatprep.subr.mxu0 0.0
    %1821 = vmatpush1.xpose.msra.mxu0 0.0
    %1822 = vmatprep.subr.mxu0 0.0
    %1823 = vmatpush1.xpose.msra.mxu0 0.0
    %1824 = vmatprep.subr.mxu0 0.0
    %1825 = vmatpush1.xpose.msra.mxu0 0.0
    %1826 = vmatprep.subr.mxu0 0.0
    %1827 = vmatpush1.xpose.msra.mxu0 0.0
    %1828 = vmatprep.subr.mxu0 0.0
    %1829 = vmatpush1.xpose.msra.mxu0 0.0
    %1830 = vmatprep.subr.mxu0 0.0
    %1831 = vmatpush1.xpose.msra.mxu0 0.0
    %1832 = vmatprep.mubr.f32.mxu0 0.0
    %1833 = vmatmul.mubr.f32.gmra.mrb[0].mxu0 %v1764
    %v1834 = vpop.f32.mrb[0].mxu0
    %v1835 = vadd.f32 0.0, %v1834
    %v1836 = vpop.f32.mrb[0].mxu0
    %1837 = vdwg.mxu0
    %v1838 = vmul.f32 %v1757, 0.35355338
    %v1839 = vmul.f32 %v1835, 0.35355338
    %v1840 = vadd.f32 %v1838, %v586
    %v1841 = vadd.f32 %v1839, %v590
    %v1842 = vsel %vm426, %v1840, -inf
    %1843 = vmax.xlane.f32.xlu0 %v1842
    %v1844 = vpop.xlane.xlu0 %1843
    %v1845 = vsel %vm426, %v1841, -inf
    %1846 = vmax.xlane.f32.xlu0 %v1845
    %v1847 = vpop.xlane.xlu0 %1846
    %v1848 = vsub.f32 %v1840, %v1844
    %v1849 = vsub.f32 %v1841, %v1847
    %v1850 = vmul.f32 %v1848, 1.442695
    %v1851 = vpow.pop %v1850
    %v1852 = vmul.f32 %v1849, 1.442695
    %v1853 = vpow.pop %v1852
    %v1854 = vsel %vm426, %v1851, 0.0
    %1855 = vadd.xlane.f32.xlu0 %v1854
    %v1856 = vpop.xlane.xlu0 %1855
    %v1857 = vsel %vm426, %v1853, 0.0
    %1858 = vadd.xlane.f32.xlu0 %v1857
    %v1859 = vpop.xlane.xlu0 %1858
    %v1860 = vrcp.pop %v1856
    %v1861 = vrcp.pop %v1859
    %v1862 = vmul.f32 %v1851, %v1860
    %v1863 = vmul.f32 %v1853, %v1861
    %1864 = vrot.lane.b32.xlu0 %v411, 104
    %v1865 = vpop.permute.xlu0 %1864
    %v1868 = vsel %vm426, %v1862, 0
    %1870 = vmatprep.subr.mxu0 0.0
    %1871 = vmatpush1.msra.mxu0 %v1865
    %1872 = vmatprep.subr.mxu0 0.0
    %1873 = vmatpush1.msra.mxu0 0.0
    %1874 = vmatprep.subr.mxu0 0.0
    %1875 = vmatpush1.msra.mxu0 0.0
    %1876 = vmatprep.subr.mxu0 0.0
    %1877 = vmatpush1.msra.mxu0 0.0
    %1878 = vmatprep.subr.mxu0 0.0
    %1879 = vmatpush1.msra.mxu0 0.0
    %1880 = vmatprep.subr.mxu0 0.0
    %1881 = vmatpush1.msra.mxu0 0.0
    %1882 = vmatprep.subr.mxu0 0.0
    %1883 = vmatpush1.msra.mxu0 0.0
    %1884 = vmatprep.subr.mxu0 0.0
    %1885 = vmatpush1.msra.mxu0 0.0
    %1886 = vmatprep.subr.mxu0 0.0
    %1887 = vmatpush1.msra.mxu0 0.0
    %1888 = vmatprep.subr.mxu0 0.0
    %1889 = vmatpush1.msra.mxu0 0.0
    %1890 = vmatprep.subr.mxu0 0.0
    %1891 = vmatpush1.msra.mxu0 0.0
    %1892 = vmatprep.subr.mxu0 0.0
    %1893 = vmatpush1.msra.mxu0 0.0
    %1894 = vmatprep.subr.mxu0 0.0
    %1895 = vmatpush1.msra.mxu0 0.0
    %1896 = vmatprep.subr.mxu0 0.0
    %1897 = vmatpush1.msra.mxu0 0.0
    %1898 = vmatprep.subr.mxu0 0.0
    %1899 = vmatpush1.msra.mxu0 0.0
    %1900 = vmatprep.subr.mxu0 0.0
    %1901 = vmatpush1.msra.mxu0 0.0
    %1902 = vmatprep.subr.mxu0 0.0
    %1903 = vmatpush1.msra.mxu0 0.0
    %1904 = vmatprep.subr.mxu0 0.0
    %1905 = vmatpush1.msra.mxu0 0.0
    %1906 = vmatprep.subr.mxu0 0.0
    %1907 = vmatpush1.msra.mxu0 0.0
    %1908 = vmatprep.subr.mxu0 0.0
    %1909 = vmatpush1.msra.mxu0 0.0
    %1910 = vmatprep.subr.mxu0 0.0
    %1911 = vmatpush1.msra.mxu0 0.0
    %1912 = vmatprep.subr.mxu0 0.0
    %1913 = vmatpush1.msra.mxu0 0.0
    %1914 = vmatprep.subr.mxu0 0.0
    %1915 = vmatpush1.msra.mxu0 0.0
    %1916 = vmatprep.subr.mxu0 0.0
    %1917 = vmatpush1.msra.mxu0 0.0
    %1918 = vmatprep.subr.mxu0 0.0
    %1919 = vmatpush1.msra.mxu0 0.0
    %1920 = vmatprep.subr.mxu0 0.0
    %1921 = vmatpush1.msra.mxu0 0.0
    %1922 = vmatprep.subr.mxu0 0.0
    %1923 = vmatpush1.msra.mxu0 0.0
    %1924 = vmatprep.subr.mxu0 0.0
    %1925 = vmatpush1.msra.mxu0 0.0
    %1926 = vmatprep.subr.mxu0 0.0
    %1927 = vmatpush1.msra.mxu0 0.0
    %1928 = vmatprep.subr.mxu0 0.0
    %1929 = vmatpush1.msra.mxu0 0.0
    %1930 = vmatprep.subr.mxu0 0.0
    %1931 = vmatpush1.msra.mxu0 0.0
    %1932 = vmatprep.subr.mxu0 0.0
    %1933 = vmatpush1.msra.mxu0 0.0
    %1934 = vmatprep.mubr.f32.mxu0 0.0
    %1935 = vmatmul.mubr.f32.gmra.mrb[0].mxu0 %v1868
    %v1936 = vpop.f32.mrb[0].mxu0
    %v1937 = vadd.f32 0.0, %v1936
    %v1938 = vpop.f32.mrb[0].mxu0
    %1939 = vdwg.mxu0
    %1940 = vrot.lane.b32.xlu0 %v416, 104
    %v1941 = vpop.permute.xlu0 %1940
    %v1944 = vsel %vm426, %v1863, 0
    %1946 = vmatprep.subr.mxu0 0.0
    %1947 = vmatpush1.msra.mxu0 %v1941
    %1948 = vmatprep.subr.mxu0 0.0
    %1949 = vmatpush1.msra.mxu0 0.0
    %1950 = vmatprep.subr.mxu0 0.0
    %1951 = vmatpush1.msra.mxu0 0.0
    %1952 = vmatprep.subr.mxu0 0.0
    %1953 = vmatpush1.msra.mxu0 0.0
    %1954 = vmatprep.subr.mxu0 0.0
    %1955 = vmatpush1.msra.mxu0 0.0
    %1956 = vmatprep.subr.mxu0 0.0
    %1957 = vmatpush1.msra.mxu0 0.0
    %1958 = vmatprep.subr.mxu0 0.0
    %1959 = vmatpush1.msra.mxu0 0.0
    %1960 = vmatprep.subr.mxu0 0.0
    %1961 = vmatpush1.msra.mxu0 0.0
    %1962 = vmatprep.subr.mxu0 0.0
    %1963 = vmatpush1.msra.mxu0 0.0
    %1964 = vmatprep.subr.mxu0 0.0
    %1965 = vmatpush1.msra.mxu0 0.0
    %1966 = vmatprep.subr.mxu0 0.0
    %1967 = vmatpush1.msra.mxu0 0.0
    %1968 = vmatprep.subr.mxu0 0.0
    %1969 = vmatpush1.msra.mxu0 0.0
    %1970 = vmatprep.subr.mxu0 0.0
    %1971 = vmatpush1.msra.mxu0 0.0
    %1972 = vmatprep.subr.mxu0 0.0
    %1973 = vmatpush1.msra.mxu0 0.0
    %1974 = vmatprep.subr.mxu0 0.0
    %1975 = vmatpush1.msra.mxu0 0.0
    %1976 = vmatprep.subr.mxu0 0.0
    %1977 = vmatpush1.msra.mxu0 0.0
    %1978 = vmatprep.subr.mxu0 0.0
    %1979 = vmatpush1.msra.mxu0 0.0
    %1980 = vmatprep.subr.mxu0 0.0
    %1981 = vmatpush1.msra.mxu0 0.0
    %1982 = vmatprep.subr.mxu0 0.0
    %1983 = vmatpush1.msra.mxu0 0.0
    %1984 = vmatprep.subr.mxu0 0.0
    %1985 = vmatpush1.msra.mxu0 0.0
    %1986 = vmatprep.subr.mxu0 0.0
    %1987 = vmatpush1.msra.mxu0 0.0
    %1988 = vmatprep.subr.mxu0 0.0
    %1989 = vmatpush1.msra.mxu0 0.0
    %1990 = vmatprep.subr.mxu0 0.0
    %1991 = vmatpush1.msra.mxu0 0.0
    %1992 = vmatprep.subr.mxu0 0.0
    %1993 = vmatpush1.msra.mxu0 0.0
    %1994 = vmatprep.subr.mxu0 0.0
    %1995 = vmatpush1.msra.mxu0 0.0
    %1996 = vmatprep.subr.mxu0 0.0
    %1997 = vmatpush1.msra.mxu0 0.0
    %1998 = vmatprep.subr.mxu0 0.0
    %1999 = vmatpush1.msra.mxu0 0.0
    %2000 = vmatprep.subr.mxu0 0.0
    %2001 = vmatpush1.msra.mxu0 0.0
    %2002 = vmatprep.subr.mxu0 0.0
    %2003 = vmatpush1.msra.mxu0 0.0
    %2004 = vmatprep.subr.mxu0 0.0
    %2005 = vmatpush1.msra.mxu0 0.0
    %2006 = vmatprep.subr.mxu0 0.0
    %2007 = vmatpush1.msra.mxu0 0.0
    %2008 = vmatprep.subr.mxu0 0.0
    %2009 = vmatpush1.msra.mxu0 0.0
    %2010 = vmatprep.mubr.f32.mxu0 0.0
    %2011 = vmatmul.mubr.f32.gmra.mrb[0].mxu0 %v1944
    %v2012 = vpop.f32.mrb[0].mxu0
    %v2013 = vadd.f32 0.0, %v2012
    %v2014 = vpop.f32.mrb[0].mxu0
    %2015 = vdwg.mxu0
    %v2017 = vsel %vm426, %v1937, 0
    %v2020 = vsel %vm426, %v2013, 0
    %2022 = vmatprep.subr.mxu0 0.0
    %2023 = vmatpush1.msra.mxu0 %v172
    %2024 = vmatprep.subr.mxu0 0.0
    %2025 = vmatpush1.msra.mxu0 0.0
    %2026 = vmatprep.subr.mxu0 0.0
    %2027 = vmatpush1.msra.mxu0 0.0
    %2028 = vmatprep.subr.mxu0 0.0
    %2029 = vmatpush1.msra.mxu0 0.0
    %2030 = vmatprep.subr.mxu0 0.0
    %2031 = vmatpush1.msra.mxu0 0.0
    %2032 = vmatprep.subr.mxu0 0.0
    %2033 = vmatpush1.msra.mxu0 0.0
    %2034 = vmatprep.subr.mxu0 0.0
    %2035 = vmatpush1.msra.mxu0 0.0
    %2036 = vmatprep.subr.mxu0 0.0
    %2037 = vmatpush1.msra.mxu0 0.0
    %2038 = vmatprep.subr.mxu0 0.0
    %2039 = vmatpush1.msra.mxu0 0.0
    %2040 = vmatprep.subr.mxu0 0.0
    %2041 = vmatpush1.msra.mxu0 0.0
    %2042 = vmatprep.subr.mxu0 0.0
    %2043 = vmatpush1.msra.mxu0 0.0
    %2044 = vmatprep.subr.mxu0 0.0
    %2045 = vmatpush1.msra.mxu0 0.0
    %2046 = vmatprep.subr.mxu0 0.0
    %2047 = vmatpush1.msra.mxu0 0.0
    %2048 = vmatprep.subr.mxu0 0.0
    %2049 = vmatpush1.msra.mxu0 0.0
    %2050 = vmatprep.subr.mxu0 0.0
    %2051 = vmatpush1.msra.mxu0 0.0
    %2052 = vmatprep.subr.mxu0 0.0
    %2053 = vmatpush1.msra.mxu0 0.0
    %2054 = vmatprep.subr.mxu0 0.0
    %2055 = vmatpush1.msra.mxu0 0.0
    %2056 = vmatprep.subr.mxu0 0.0
    %2057 = vmatpush1.msra.mxu0 0.0
    %2058 = vmatprep.subr.mxu0 0.0
    %2059 = vmatpush1.msra.mxu0 0.0
    %2060 = vmatprep.subr.mxu0 0.0
    %2061 = vmatpush1.msra.mxu0 0.0
    %2062 = vmatprep.subr.mxu0 0.0
    %2063 = vmatpush1.msra.mxu0 0.0
    %2064 = vmatprep.subr.mxu0 0.0
    %2065 = vmatpush1.msra.mxu0 0.0
    %2066 = vmatprep.subr.mxu0 0.0
    %2067 = vmatpush1.msra.mxu0 0.0
    %2068 = vmatprep.subr.mxu0 0.0
    %2069 = vmatpush1.msra.mxu0 0.0
    %2070 = vmatprep.subr.mxu0 0.0
    %2071 = vmatpush1.msra.mxu0 0.0
    %2072 = vmatprep.subr.mxu0 0.0
    %2073 = vmatpush1.msra.mxu0 0.0
    %2074 = vmatprep.subr.mxu0 0.0
    %2075 = vmatpush1.msra.mxu0 0.0
    %2076 = vmatprep.subr.mxu0 0.0
    %2077 = vmatpush1.msra.mxu0 0.0
    %2078 = vmatprep.subr.mxu0 0.0
    %2079 = vmatpush1.msra.mxu0 0.0
    %2080 = vmatprep.subr.mxu0 0.0
    %2081 = vmatpush1.msra.mxu0 0.0
    %2082 = vmatprep.subr.mxu0 0.0
    %2083 = vmatpush1.msra.mxu0 0.0
    %2084 = vmatprep.subr.mxu0 0.0
    %2085 = vmatpush1.msra.mxu0 0.0
    %2086 = vmatprep.mubr.f32.mxu0 0.0
    %2087 = vmatmul.mubr.f32.gmra.mrb[0].mxu0 %v2017
    %v2088 = vpop.f32.mrb[0].mxu0
    %v2089 = vadd.f32 0.0, %v2088
    %v2090 = vpop.f32.mrb[0].mxu0
    %2091 = vmatprep.mubr.f32.mxu0 0.0
    %2092 = vmatmul.mubr.f32.gmra.mrb[0].mxu0 %v2020
    %v2093 = vpop.f32.mrb[0].mxu0
    %v2094 = vadd.f32 0.0, %v2093
    %v2095 = vpop.f32.mrb[0].mxu0
    %2096 = vdwg.mxu0
    %v2097 = vadd.f32 %v1680, %v2089
    %v2098 = vadd.f32 %v1681, %v2094
    %v2099 = vld [vmem:[#allocation7 + $0x6] sm:$0x1]
    %v2100 = vld [vmem:[#allocation7 + $0x7] sm:$0x1]
    %v2101 = vsel %vm108, %v2097, 0.0
    %2102 = vadd.xlane.f32.xlu0 %v2101
    %v2103 = vpop.xlane.xlu0 %2102
    %v2104 = vsel %vm108, %v2098, 0.0
    %2105 = vadd.xlane.f32.xlu0 %v2104
    %v2106 = vpop.xlane.xlu0 %2105
    %v2107 = vmul.f32 %v2103, %v115
    %v2108 = vmul.f32 %v2106, %v115
    %v2109 = vsub.f32 %v2097, %v2107
    %v2110 = vsub.f32 %v2098, %v2108
    %v2111 = vmul.f32 %v2109, %v2109
    %v2112 = vmul.f32 %v2110, %v2110
    %v2113 = vsel %vm108, %v2111, 0.0
    %2114 = vadd.xlane.f32.xlu0 %v2113
    %v2115 = vpop.xlane.xlu0 %2114
    %v2116 = vsel %vm108, %v2112, 0.0
    %2117 = vadd.xlane.f32.xlu0 %v2116
    %v2118 = vpop.xlane.xlu0 %2117
    %v2119 = vmul.f32 %v2115, %v115
    %v2120 = vmul.f32 %v2118, %v115
    %v2121 = vadd.f32 %v2119, 1e-12
    %v2122 = vadd.f32 %v2120, 1e-12
    %v2123 = vrsqrt.pop %v2121
    %v2124 = vrsqrt.pop %v2122
    %v2125 = vmul.f32 %v2109, %v2123
    %v2126 = vmul.f32 %v2110, %v2124
    %v2127 = vlaneseq
    %v2128 = vshrl.u32 %v2127, 7
    %v2129 = vsub.s32 0, %v2128
    %v2130 = vrot.slane %v2099, %v2129
    %v2131 = vmul.f32 %v2125, %v2130
    %v2132 = vmul.f32 %v2126, %v2130
    %v2133 = vlaneseq
    %v2134 = vshrl.u32 %v2133, 7
    %v2135 = vsub.s32 0, %v2134
    %v2136 = vrot.slane %v2100, %v2135
    %v2137 = vadd.f32 %v2131, %v2136
    %v2138 = vadd.f32 %v2132, %v2136
    %v2139 = vlaneseq
    %v2140 = vshrl.u32 %v2139, 7
    %v2141 = vsub.s32 0, %v2140
    %v2142 = vrot.slane %v148, %v2141
    %2144 = vbcast.lane.b32.xlu0 %v2142, 256
    %v2145 = vpop.permute.xlu0 %2144
    %v2146 = vlaneseq
    %v2147 = vshrl.u32 %v2146, 7
    %v2148 = vsub.s32 0, %v2147
    %v2149 = vrot.slane %v149, %v2148
    %2151 = vbcast.lane.b32.xlu0 %v2149, 256
    %v2152 = vpop.permute.xlu0 %2151
    %v2153 = vmul.f32 %v2137, %v2145
    %v2154 = vmul.f32 %v2138, %v2152
    %v2155 = vsel %vm108, %v2153, 0.0
    %v2156 = vrot.slane %v2155, 4
    %v2157 = vadd.f32 %v2155, %v2156
    %v2158 = vrot.slane %v2157, 2
    %v2159 = vadd.f32 %v2157, %v2158
    %v2160 = vrot.slane %v2159, 1
    %v2161 = vadd.f32 %v2159, %v2160
    %v2162 = vsel %vm108, %v2154, 0.0
    %v2163 = vrot.slane %v2162, 4
    %v2164 = vadd.f32 %v2162, %v2163
    %v2165 = vrot.slane %v2164, 2
    %v2166 = vadd.f32 %v2164, %v2165
    %v2167 = vrot.slane %v2166, 1
    %v2168 = vadd.f32 %v2166, %v2167
    %v2171 = vcombine.low %v148, %v149
    %v2173 = vunpack.c.l.s4 1966171168
    %v2174 = vunpack.c.0.s8 %v2173
    %v2175 = vlaneseq
    %v2176 = vshrl.u32 %v2175, 7
    %v2177 = vsub.s32 %v2174, %v2176
    %v2178 = vrot.slane %v2171, %v2177
    %v2180 = vunpack.c.l.s4 1966171168
    %v2181 = vunpack.c.0.s8 %v2180
    %v2182 = vlaneseq
    %v2183 = vshrl.u32 %v2182, 7
    %v2184 = vsub.s32 %v2181, %v2183
    %v2185 = vrot.slane %v2178, %v2184
    %vm2187 = vcmask 58368
    %v2188 = vsel %vm2187, %v2185, 0.0
    %2189 = vadd.xlane.f32.xlu0 %v2188
    %v2190 = vpop.xlane.xlu0 %2189
    %v2191 = vmax.f32 %v2190, 1e-09
    %v2192 = vrcp.pop %v2191
    %v2194 = vrot.slane %v2192, 1
    %v2197 = vmul.f32 %v2161, %v2192
    %v2198 = vmul.f32 %v2168, %v2194
    %v2199 = vld [vmem:[#allocation7 + $0x8] sm:$0x1]
    %v2200 = vld [vmem:[#allocation7 + $0x9] sm:$0x1]
    %v2203 = vrot.slane %v2198, 7
    %vm2204 = vcmask 1041409
    %v2205 = vsel %vm2204, %v2203, %v2197
    %vm2207 = vcmask 254976
    %v2208 = vsel %vm2207, %v2205, 0.0
    %2209 = vadd.xlane.f32.xlu0 %v2208
    %v2210 = vpop.xlane.xlu0 %2209
    %v2211 = vmul.f32 %v2210, %v115
    %v2213 = vrot.slane %v2211, 1
    %v2216 = vsub.f32 %v2197, %v2211
    %v2217 = vsub.f32 %v2198, %v2213
    %v2218 = vmul.f32 %v2216, %v2216
    %v2219 = vmul.f32 %v2217, %v2217
    %v2222 = vrot.slane %v2219, 7
    %v2223 = vsel %vm2204, %v2222, %v2218
    %v2225 = vsel %vm2207, %v2223, 0.0
    %2226 = vadd.xlane.f32.xlu0 %v2225
    %v2227 = vpop.xlane.xlu0 %2226
    %v2228 = vmul.f32 %v2227, %v115
    %v2229 = vadd.f32 %v2228, 1e-07
    %v2230 = vrsqrt.pop %v2229
    %v2232 = vrot.slane %v2230, 1
    %v2235 = vmul.f32 %v2216, %v2230
    %v2236 = vmul.f32 %v2217, %v2232
    %v2237 = vlaneseq
    %v2238 = vshrl.u32 %v2237, 7
    %v2239 = vsub.s32 0, %v2238
    %v2240 = vrot.slane %v2199, %v2239
    %v2241 = vmul.f32 %v2235, %v2240
    %v2242 = vmul.f32 %v2236, %v2240
    %v2243 = vlaneseq
    %v2244 = vshrl.u32 %v2243, 7
    %v2245 = vsub.s32 0, %v2244
    %v2246 = vrot.slane %v2200, %v2245
    %v2247 = vadd.f32 %v2241, %v2246
    %v2248 = vadd.f32 %v2242, %v2246
    %v2251 = vrot.slane %v2248, 7
    %v2252 = vsel %vm2204, %v2251, %v2247
    %2254 = vst.msk [vmem:[#allocation10] sm:$0x3] %vm2207, %v2252
    // Predicated region
    $region38: #{tpu_custom_call.1} parent=1 // pred_check
      _
    $region39: #{tpu_custom_call.1} parent=1 // pred_check_branch
      %2256 = sbr.rel (0) target = $region41
    $region40: #{tpu_custom_call.1} parent=1 // pred_region
      %s2258 = ssub.s32 32, 32
      %2259 = vsyncadd [#allocation4], %s2258
      %s2261 = sshll.u32 [#allocation10], 4
      %s2262 = int_to_ptr.vmem [resolvable:$true] %s2261
      %2264 = dma.vmem_to_hbm [thread:$0]  %s2262, 32, %s5, [#allocation4]
    $region41: #{tpu_custom_call.1} parent=1 // pred_fallthru
      _
    // Predicated region
    $region42: #{tpu_custom_call.1} parent=1 // pred_check
      _
    $region43: #{tpu_custom_call.1} parent=1 // pred_check_branch
      %2266 = sbr.rel (0) target = $region45
    $region44: #{tpu_custom_call.1} parent=1 // pred_region
      %2267 = dma.done [#allocation4], 32
    $region45: #{tpu_custom_call.1} parent=1 // pred_fallthru
      _
    %2268 = vsyncpa [#allocation3], 1
    %2269 = vsyncpa [#allocation8], 1
    %2270 = vsyncpa [#allocation4], 1
    %2271 = vsyncpa [#allocation5], 1

</llo_original>
